<compile_context>
chip_gen: v6e
topology: v6e:2x2x1
jax: 0.10.0
libtpu: 0.0.40
codegen_flags: <defaults>
</compile_context>

<pallas_src>
import functools
import math

import jax
import jax.numpy as jnp
import numpy as np
from jax import lax
from jax.experimental import pallas as pl
from jax.experimental.pallas import tpu as pltpu

EPS = 1e-7
_MATS_PER_ROW = 128                    # matrices packed per input row
_ROW_WIDTH = 9 * _MATS_PER_ROW         # 1152 lanes per packed row
_TR_MAX = 512                          # rows per grid step (=> 65536 matrices, ~4.5 MiB input/step)

# Constant 0/1 selector: column n sums the 9 adjacent lanes of matrix slot n.
_SEL_NP = np.zeros((_ROW_WIDTH, _MATS_PER_ROW), dtype=np.float32)
_SEL_NP[np.arange(_ROW_WIDTH), np.arange(_ROW_WIDTH) // 9] = 1.0


def _round_up(x, m):
    return (x + m - 1) // m * m


def _cdiv(a, b):
    return (a + b - 1) // b


def _acos_poly(x):
    """arccos(x) for x in [-1, 1] via Abramowitz & Stegun 4.4.45 (|err| ~ 1e-7).

    Uses only mul/add/abs/select (VPU) plus one sqrt (EUP).
    """
    ax = jnp.abs(x)
    p = jnp.float32(-0.0012624911)
    p = p * ax + jnp.float32(0.0066700901)
    p = p * ax + jnp.float32(-0.0170881256)
    p = p * ax + jnp.float32(0.0308918810)
    p = p * ax + jnp.float32(-0.0501743046)
    p = p * ax + jnp.float32(0.0889789874)
    p = p * ax + jnp.float32(-0.2145988016)
    p = p * ax + jnp.float32(1.5707963050)
    r = jnp.sqrt(jnp.maximum(1.0 - ax, 0.0)) * p
    return jnp.where(x < 0.0, jnp.float32(math.pi) - r, r)


def _split3_bf16(x):
    """bf16x3 decomposition of f32 x: x ~= hi + mid + lo to ~2^-24 relative."""
    hi = x.astype(jnp.bfloat16)
    r1 = x - hi.astype(jnp.float32)
    mid = r1.astype(jnp.bfloat16)
    lo = (r1 - mid.astype(jnp.float32)).astype(jnp.bfloat16)
    return hi, mid, lo


def _geodesic_partial_kernel(nvalid_ref, m1_ref, m2_ref, sel_ref, psum_ref, *,
                             eps, mats_per_tile):
    # nvalid_ref: (1,) int32 scalar-prefetch (true batch size B).
    # m1_ref, m2_ref: (TR, 1152) packed tiles (128 matrices per row).
    # sel_ref: (1152, 128) bf16 0/1 selector (constant block index -> fetched once).
    # psum_ref: (1, 1, 1) per-tile partial theta-sum.
    prod = m1_ref[...].astype(jnp.float32) * m2_ref[...].astype(jnp.float32)

    # Segmented sum of each matrix's 9 lanes on the (idle) MXU, f32-accurate via
    # the bf16x3 split.  Result is a fully lane-dense (TR, 128) trace tile.
    hi, mid, lo = _split3_bf16(prod)
    sel = sel_ref[...]
    traces = (jnp.dot(hi, sel, preferred_element_type=jnp.float32)
              + jnp.dot(mid, sel, preferred_element_type=jnp.float32)
              + jnp.dot(lo, sel, preferred_element_type=jnp.float32))

    # Lane-dense clip / acos chain.
    cos = jnp.clip((traces - 1.0) * 0.5, -1.0 + eps, 1.0 - eps)
    theta = _acos_poly(cos)                                        # (TR, 128)

    pid = pl.program_id(0)
    last = pl.num_programs(0) - 1

    @pl.when(pid != last)
    def _():
        psum_ref[...] = jnp.sum(theta, keepdims=True).reshape(1, 1, 1)

    @pl.when(pid == last)
    def _():
        # All batch padding lives in the last tile; mask it out of the sum.
        row = lax.broadcasted_iota(jnp.int32, theta.shape, 0)
        col = lax.broadcasted_iota(jnp.int32, theta.shape, 1)
        mat_idx = pid * mats_per_tile + row * _MATS_PER_ROW + col
        masked = jnp.where(mat_idx < nvalid_ref[0], theta, 0.0)
        psum_ref[...] = jnp.sum(masked, keepdims=True).reshape(1, 1, 1)


def geodesic_loss(m1, m2, eps=EPS):
    """m1, m2: (B, 3, 3) rotation matrices. Returns scalar mean geodesic angle."""
    B = m1.shape[0]

    # Row-major flatten + pack 128 matrices per row: pure reshapes, no HBM
    # transpose, inputs stay in their incoming dtype (upcast inside the kernel).
    m1f = m1.reshape(B, 9)
    m2f = m2.reshape(B, 9)

    rows = _cdiv(B, _MATS_PER_ROW)
    # Rows per tile: multiple of 8, >=2 tiles when possible (v7x megacore),
    # capped so VMEM stays well inside every generation's budget.
    tr = min(_TR_MAX, max(8, _round_up(_cdiv(rows, 2), 8)))
    num_tiles = _cdiv(rows, tr)
    rows_pad = num_tiles * tr
    b_pad = rows_pad * _MATS_PER_ROW
    if b_pad != B:
        m1f = jnp.pad(m1f, ((0, b_pad - B), (0, 0)))
        m2f = jnp.pad(m2f, ((0, b_pad - B), (0, 0)))
    m1p = m1f.reshape(rows_pad, _ROW_WIDTH)
    m2p = m2f.reshape(rows_pad, _ROW_WIDTH)

    sel = jnp.asarray(_SEL_NP, dtype=jnp.bfloat16)
    nvalid = jnp.array([B], dtype=jnp.int32)

    grid_spec = pltpu.PrefetchScalarGridSpec(
        num_scalar_prefetch=1,
        grid=(num_tiles,),
        in_specs=[
            pl.BlockSpec((tr, _ROW_WIDTH), lambda i, n: (i, 0)),
            pl.BlockSpec((tr, _ROW_WIDTH), lambda i, n: (i, 0)),
            pl.BlockSpec((_ROW_WIDTH, _MATS_PER_ROW), lambda i, n: (0, 0)),
        ],
        out_specs=pl.BlockSpec((1, 1, 1), lambda i, n: (i, 0, 0)),
    )

    partials = pl.pallas_call(
        functools.partial(_geodesic_partial_kernel, eps=eps,
                          mats_per_tile=tr * _MATS_PER_ROW),
        out_shape=jax.ShapeDtypeStruct((num_tiles, 1, 1), jnp.float32),
        grid_spec=grid_spec,
        compiler_params=pltpu.CompilerParams(
            dimension_semantics=("parallel",),
            vmem_limit_bytes=32 * 1024 * 1024,
        ),
    )(nvalid, m1p, m2p, sel)

    # O(num_tiles) scalars left for XLA; divide by the true B (not the padded B).
    return jnp.sum(partials) / jnp.float32(B)


def _reference(m1, m2, eps=EPS):
    m = jnp.einsum("bij,bkj->bik", m1, m2, precision=lax.Precision.HIGHEST)
    cos = (m[:, 0, 0] + m[:, 1, 1] + m[:, 2, 2] - 1.0) / 2.0
    theta = jnp.arccos(jnp.clip(cos, -1.0 + eps, 1.0 - eps))
    return jnp.mean(theta)


def _make_rotations(key, b):
    k1, k2 = jax.random.split(key)
    a1 = jax.random.normal(k1, (b, 3, 3), dtype=jnp.float32)
    a2 = jax.random.normal(k2, (b, 3, 3), dtype=jnp.float32)
    m1, _ = jnp.linalg.qr(a1)
    m2, _ = jnp.linalg.qr(a2)
    return m1, m2


if __name__ == "__main__":
    key = jax.random.PRNGKey(0)
    k_a, k_b, k_c = jax.random.split(key, 3)

    # Small batch: single grid tile, exercises the pad + last-tile mask path.
    m1, m2 = _make_rotations(k_a, 8)
    loss = jax.block_until_ready(geodesic_loss(m1, m2))
    ref = jax.block_until_ready(_reference(m1, m2))
    np.testing.assert_allclose(np.asarray(loss), np.asarray(ref), rtol=1e-5, atol=1e-5)

    # Batch that is not a multiple of 8/128.
    m1b, m2b = _make_rotations(k_b, 13)
    loss_b = jax.block_until_ready(geodesic_loss(m1b, m2b))
    ref_b = jax.block_until_ready(_reference(m1b, m2b))
    np.testing.assert_allclose(np.asarray(loss_b), np.asarray(ref_b), rtol=1e-5, atol=1e-5)

    # Multi-tile grid: exercises the unmasked (non-last-tile) branch too.
    m1c, m2c = _make_rotations(k_c, 2000)
    loss_c = jax.block_until_ready(geodesic_loss(m1c, m2c))
    ref_c = jax.block_until_ready(_reference(m1c, m2c))
    np.testing.assert_allclose(np.asarray(loss_c), np.asarray(ref_c), rtol=1e-5, atol=1e-5)

    print("KERNEL_OK")
</pallas_src>

<mosaic_0001>
module attributes {stable_mosaic.version = 11 : i64} {
  func.func @_geodesic_partial_kernel(%arg0: i32, %arg1: memref<1xi32, #tpu.memory_space<smem>>, %arg2: memref<8x1152xf32, #tpu.memory_space<vmem>>, %arg3: memref<8x1152xf32, #tpu.memory_space<vmem>>, %arg4: memref<1152x128xbf16, #tpu.memory_space<vmem>>, %arg5: memref<1x1x1xf32, #tpu.memory_space<vmem>>) attributes {dimension_semantics = [#tpu.dimension_semantics<parallel>], iteration_bounds = array<i64: 1>, scalar_prefetch = 1 : i64, scratch_operands = 0 : i64, tpu.core_type = #tpu.core_type<tc>, window_params = [{transform_indices = @transform_0, window_bounds = array<i64: 8, 1152>}, {transform_indices = @transform_1, window_bounds = array<i64: 8, 1152>}, {pipeline_mode = #tpu.pipeline_mode<synchronous>, transform_indices = @transform_2, window_bounds = array<i64: 1152, 128>}, {transform_indices = @transform_3, window_bounds = array<i64: 1, 1, 1>}]} {
    %c0 = arith.constant 0 : index
    %c0_0 = arith.constant 0 : index
    %0 = vector.load %arg2[%c0, %c0_0] : memref<8x1152xf32, #tpu.memory_space<vmem>>, vector<8x1152xf32>
    %c0_1 = arith.constant 0 : index
    %c0_2 = arith.constant 0 : index
    %1 = vector.load %arg3[%c0_1, %c0_2] : memref<8x1152xf32, #tpu.memory_space<vmem>>, vector<8x1152xf32>
    %2 = arith.mulf %0, %1 : vector<8x1152xf32>
    %3 = arith.truncf %2 : vector<8x1152xf32> to vector<8x1152xbf16>
    %4 = arith.extf %3 : vector<8x1152xbf16> to vector<8x1152xf32>
    %5 = arith.subf %2, %4 : vector<8x1152xf32>
    %6 = arith.truncf %5 : vector<8x1152xf32> to vector<8x1152xbf16>
    %7 = arith.extf %6 : vector<8x1152xbf16> to vector<8x1152xf32>
    %8 = arith.subf %5, %7 : vector<8x1152xf32>
    %9 = arith.truncf %8 : vector<8x1152xf32> to vector<8x1152xbf16>
    %c0_3 = arith.constant 0 : index
    %c0_4 = arith.constant 0 : index
    %10 = vector.load %arg4[%c0_3, %c0_4] : memref<1152x128xbf16, #tpu.memory_space<vmem>>, vector<1152x128xbf16>
    %cst = arith.constant dense<0.000000e+00> : vector<8x128xf32>
    %11 = tpu.matmul %3, %10, %cst {dimension_numbers = #tpu.dot_dimension_numbers<[1], [0], [0], [1], [0, 0, 1, 1], [], []>} : vector<8x1152xbf16>, vector<1152x128xbf16>, vector<8x128xf32> -> vector<8x128xf32>
    %cst_5 = arith.constant dense<0.000000e+00> : vector<8x128xf32>
    %12 = tpu.matmul %6, %10, %cst_5 {dimension_numbers = #tpu.dot_dimension_numbers<[1], [0], [0], [1], [0, 0, 1, 1], [], []>} : vector<8x1152xbf16>, vector<1152x128xbf16>, vector<8x128xf32> -> vector<8x128xf32>
    %13 = arith.addf %11, %12 : vector<8x128xf32>
    %cst_6 = arith.constant dense<0.000000e+00> : vector<8x128xf32>
    %14 = tpu.matmul %9, %10, %cst_6 {dimension_numbers = #tpu.dot_dimension_numbers<[1], [0], [0], [1], [0, 0, 1, 1], [], []>} : vector<8x1152xbf16>, vector<1152x128xbf16>, vector<8x128xf32> -> vector<8x128xf32>
    %15 = arith.addf %13, %14 : vector<8x128xf32>
    %cst_7 = arith.constant 1.000000e+00 : f32
    %16 = vector.broadcast %cst_7 : f32 to vector<8x128xf32>
    %17 = arith.subf %15, %16 : vector<8x128xf32>
    %cst_8 = arith.constant 5.000000e-01 : f32
    %18 = vector.broadcast %cst_8 : f32 to vector<8x128xf32>
    %19 = arith.mulf %17, %18 : vector<8x128xf32>
    %cst_9 = arith.constant -0.99999988 : f32
    %cst_10 = arith.constant 0.99999988 : f32
    %20 = vector.broadcast %cst_9 : f32 to vector<8x128xf32>
    %21 = arith.maximumf %20, %19 : vector<8x128xf32>
    %22 = vector.broadcast %cst_10 : f32 to vector<8x128xf32>
    %23 = arith.minimumf %22, %21 : vector<8x128xf32>
    %24 = math.absf %23 : vector<8x128xf32>
    %cst_11 = arith.constant -0.0012624911 : f32
    %25 = vector.broadcast %cst_11 : f32 to vector<8x128xf32>
    %26 = arith.mulf %25, %24 : vector<8x128xf32>
    %cst_12 = arith.constant 6.670090e-03 : f32
    %27 = vector.broadcast %cst_12 : f32 to vector<8x128xf32>
    %28 = arith.addf %26, %27 : vector<8x128xf32>
    %29 = arith.mulf %28, %24 : vector<8x128xf32>
    %cst_13 = arith.constant -0.0170881264 : f32
    %30 = vector.broadcast %cst_13 : f32 to vector<8x128xf32>
    %31 = arith.addf %29, %30 : vector<8x128xf32>
    %32 = arith.mulf %31, %24 : vector<8x128xf32>
    %cst_14 = arith.constant 0.0308918804 : f32
    %33 = vector.broadcast %cst_14 : f32 to vector<8x128xf32>
    %34 = arith.addf %32, %33 : vector<8x128xf32>
    %35 = arith.mulf %34, %24 : vector<8x128xf32>
    %cst_15 = arith.constant -0.0501743034 : f32
    %36 = vector.broadcast %cst_15 : f32 to vector<8x128xf32>
    %37 = arith.addf %35, %36 : vector<8x128xf32>
    %38 = arith.mulf %37, %24 : vector<8x128xf32>
    %cst_16 = arith.constant 0.0889789909 : f32
    %39 = vector.broadcast %cst_16 : f32 to vector<8x128xf32>
    %40 = arith.addf %38, %39 : vector<8x128xf32>
    %41 = arith.mulf %40, %24 : vector<8x128xf32>
    %cst_17 = arith.constant -0.214598805 : f32
    %42 = vector.broadcast %cst_17 : f32 to vector<8x128xf32>
    %43 = arith.addf %41, %42 : vector<8x128xf32>
    %44 = arith.mulf %43, %24 : vector<8x128xf32>
    %cst_18 = arith.constant 1.57079625 : f32
    %45 = vector.broadcast %cst_18 : f32 to vector<8x128xf32>
    %46 = arith.addf %44, %45 : vector<8x128xf32>
    %cst_19 = arith.constant 1.000000e+00 : f32
    %47 = vector.broadcast %cst_19 : f32 to vector<8x128xf32>
    %48 = arith.subf %47, %24 : vector<8x128xf32>
    %cst_20 = arith.constant 0.000000e+00 : f32
    %49 = vector.broadcast %cst_20 : f32 to vector<8x128xf32>
    %50 = arith.maximumf %48, %49 : vector<8x128xf32>
    %51 = math.sqrt %50 : vector<8x128xf32>
    %52 = arith.mulf %51, %46 : vector<8x128xf32>
    %cst_21 = arith.constant 0.000000e+00 : f32
    %53 = vector.broadcast %cst_21 : f32 to vector<8x128xf32>
    %54 = arith.cmpf olt, %23, %53 : vector<8x128xf32>
    %cst_22 = arith.constant 3.14159274 : f32
    %55 = vector.broadcast %cst_22 : f32 to vector<8x128xf32>
    %56 = arith.subf %55, %52 : vector<8x128xf32>
    %57 = arith.select %54, %56, %52 : vector<8x128xi1>, vector<8x128xf32>
    %c0_i32 = arith.constant 0 : i32
    %58 = arith.cmpi ne, %arg0, %c0_i32 : i32
    %59 = arith.extui %58 : i1 to i32
    %c0_i32_23 = arith.constant 0 : i32
    %60 = arith.cmpi ne, %59, %c0_i32_23 : i32
    scf.if %60 {
      %64 = vector.shape_cast %57 : vector<8x128xf32> to vector<1x8x128xf32>
      %cst_26 = arith.constant dense<0.000000e+00> : vector<1xf32>
      %65 = vector.multi_reduction <add>, %64, %cst_26 [1, 2] : vector<1x8x128xf32> to vector<1xf32>
      %66 = vector.shape_cast %65 : vector<1xf32> to vector<1x1x1xf32>
      %67 = vector.extract %66[0, 0, 0] : f32 from vector<1x1x1xf32>
      %68 = vector.broadcast %67 : f32 to vector<1x1xf32>
      %69 = vector.shape_cast %68 : vector<1x1xf32> to vector<1x1x1xf32>
      %c0_27 = arith.constant 0 : index
      %c0_28 = arith.constant 0 : index
      %c0_29 = arith.constant 0 : index
      %70 = vector.load %arg5[%c0_27, %c0_28, %c0_29] : memref<1x1x1xf32, #tpu.memory_space<vmem>>, vector<1x1x1xf32>
      tpu.vector_store %arg5[%c0_27, %c0_28, %c0_29], %69 {strides = array<i32>} : memref<1x1x1xf32, #tpu.memory_space<vmem>>, vector<1x1x1xf32>,
    } else {
    }
    %c0_i32_24 = arith.constant 0 : i32
    %61 = arith.cmpi eq, %arg0, %c0_i32_24 : i32
    %62 = arith.extui %61 : i1 to i32
    %c0_i32_25 = arith.constant 0 : i32
    %63 = arith.cmpi ne, %62, %c0_i32_25 : i32
    scf.if %63 {
      %64 = tpu.iota {dimensions = array<i32: 0>} : vector<8x128xi32>
      %65 = tpu.iota {dimensions = array<i32: 1>} : vector<8x128xi32>
      %c1024_i32 = arith.constant 1024 : i32
      %66 = arith.muli %arg0, %c1024_i32 : i32
      %c128_i32 = arith.constant 128 : i32
      %67 = vector.broadcast %c128_i32 : i32 to vector<8x128xi32>
      %68 = arith.muli %64, %67 : vector<8x128xi32>
      %69 = vector.broadcast %66 : i32 to vector<8x128xi32>
      %70 = arith.addi %69, %68 : vector<8x128xi32>
      %71 = arith.addi %70, %65 : vector<8x128xi32>
      %c0_26 = arith.constant 0 : index
      %72 = memref.load %arg1[%c0_26] : memref<1xi32, #tpu.memory_space<smem>>
      %73 = vector.broadcast %72 : i32 to vector<8x128xi32>
      %74 = arith.cmpi slt, %71, %73 : vector<8x128xi32>
      %cst_27 = arith.constant 0.000000e+00 : f32
      %75 = vector.broadcast %cst_27 : f32 to vector<8x128xf32>
      %76 = arith.select %74, %57, %75 : vector<8x128xi1>, vector<8x128xf32>
      %77 = vector.shape_cast %76 : vector<8x128xf32> to vector<1x8x128xf32>
      %cst_28 = arith.constant dense<0.000000e+00> : vector<1xf32>
      %78 = vector.multi_reduction <add>, %77, %cst_28 [1, 2] : vector<1x8x128xf32> to vector<1xf32>
      %79 = vector.shape_cast %78 : vector<1xf32> to vector<1x1x1xf32>
      %80 = vector.extract %79[0, 0, 0] : f32 from vector<1x1x1xf32>
      %81 = vector.broadcast %80 : f32 to vector<1x1xf32>
      %82 = vector.shape_cast %81 : vector<1x1xf32> to vector<1x1x1xf32>
      %c0_29 = arith.constant 0 : index
      %c0_30 = arith.constant 0 : index
      %c0_31 = arith.constant 0 : index
      %83 = vector.load %arg5[%c0_29, %c0_30, %c0_31] : memref<1x1x1xf32, #tpu.memory_space<vmem>>, vector<1x1x1xf32>
      tpu.vector_store %arg5[%c0_29, %c0_30, %c0_31], %82 {strides = array<i32>} : memref<1x1x1xf32, #tpu.memory_space<vmem>>, vector<1x1x1xf32>,
    } else {
    }
    return
  }
  func.func @transform_0(%arg0: i32, %arg1: memref<1xi32, #tpu.memory_space<smem>>) -> (i32, i32) {
    %c0_i32 = arith.constant 0 : i32
    %c0_i32_0 = arith.constant 0 : i32
    return %arg0, %c0_i32 : i32, i32
  }
  func.func @transform_1(%arg0: i32, %arg1: memref<1xi32, #tpu.memory_space<smem>>) -> (i32, i32) {
    %c0_i32 = arith.constant 0 : i32
    %c0_i32_0 = arith.constant 0 : i32
    return %arg0, %c0_i32 : i32, i32
  }
  func.func @transform_2(%arg0: i32, %arg1: memref<1xi32, #tpu.memory_space<smem>>) -> (i32, i32) {
    %c0_i32 = arith.constant 0 : i32
    %c0_i32_0 = arith.constant 0 : i32
    %c0_i32_1 = arith.constant 0 : i32
    return %c0_i32, %c0_i32_0 : i32, i32
  }
  func.func @transform_3(%arg0: i32, %arg1: memref<1xi32, #tpu.memory_space<smem>>) -> (i32, i32, i32) {
    %c0_i32 = arith.constant 0 : i32
    %c0_i32_0 = arith.constant 0 : i32
    %c0_i32_1 = arith.constant 0 : i32
    return %arg0, %c0_i32, %c0_i32_0 : i32, i32, i32
  }
}

</mosaic_0001>

<llo_original>
// kernel: tpu_custom_call.1
$region0: #{tpu_custom_call.1}
  #allocation0 [shape = 'u32[]', space=smem, size = 0x4, offset = 0x4, fixed_abs, tag = 'smem constant byte address 0x4 - core index']
  #allocation1 [shape = 'u32[144,128]{1,0:T(1,128)}', space=vmem, size = 0x12000, scoped, tag = 'internal scratch']
  #allocation2 [shape = 's32[1]{0}', space=sflag, size = 0x4, scoped, tag = 'scoped memory for tpu_custom_call.1']
  #allocation3 [shape = 's32[1]{0:T(128)S(6)}', space=smem, size = 0x200, scoped, tag = 'prefetched SMEM operand 0']
  %s0 = inlined_call_operand.<no memory space> [shape: s32[1], index: 0, kind: input, shape index: {}]
  %s1 = inlined_call_operand.hbm [shape: f32[8,1152], index: 1, kind: input, shape index: {}]
  %s2 = inlined_call_operand.hbm [shape: f32[8,1152], index: 2, kind: input, shape index: {}]
  %s3 = inlined_call_operand.hbm [shape: bf16[1152,128], index: 3, kind: input, shape index: {}]
  %s4 = inlined_call_operand.hbm [shape: f32[1,1,1], index: 4, kind: output, shape index: {}]
  %s5 = sld [smem:[#allocation0]]
  $region42: #{tpu_custom_call.1} parent=0
    _
  %s7 = ssub.s32 1, %s5
  %s8 = scalar_select 0, %s7, %s5
  %9 = sst [smem:[#allocation3]] %s0
  $region1: #{tpu_custom_call.1} parent=0
    #allocation4 [shape = 'u8[36864]{0}', space=vmem, size = 0x9000, scoped, tag = 'input window, operand 1, single buffered']
    #allocation5 [shape = 's32[1]{0}', space=sflag, size = 0x4, scoped, tag = 'scoped memory for tpu_custom_call.1']
    #allocation6 [shape = 's32[1]{0}', space=sflag, size = 0x4, scoped, tag = 'scoped memory for tpu_custom_call.1']
    #allocation7 [shape = 'u8[36864]{0}', space=vmem, size = 0x9000, scoped, tag = 'input window, operand 2, single buffered']
    #allocation8 [shape = 's32[1]{0}', space=sflag, size = 0x4, scoped, tag = 'scoped memory for tpu_custom_call.1']
    #allocation9 [shape = 'u8[294912]{0}', space=vmem, size = 0x48000, scoped, tag = 'input window, operand 3, single buffered']
    #allocation10 [shape = 'u8[512]{0}', space=vmem, size = 0x400, scoped, tag = 'output window, operand 0, single buffered']
    %10 = vsyncpa [#allocation5], 0
    %11 = vsyncpa [#allocation8], 0
    %12 = vsyncpa [#allocation6], 0
    // Predicated region
    $region2: #{tpu_custom_call.1} parent=1 // pred_check
      _
    $region3: #{tpu_custom_call.1} parent=1 // pred_check_branch
      %14 = sbr.rel (0) target = $region5
    $region4: #{tpu_custom_call.1} parent=1 // pred_region
      %s16 = ssub.s32 1152, 1152
      %17 = vsyncadd [#allocation5], %s16
      %s19 = sshll.u32 [#allocation4], 4
      %s20 = int_to_ptr.vmem [resolvable:$true] %s19
      %22 = dma.hbm_to_vmem [thread:$0]  %s1, 1152, %s20, [#allocation5]
    $region5: #{tpu_custom_call.1} parent=1 // pred_fallthru
      _
    // Predicated region
    $region6: #{tpu_custom_call.1} parent=1 // pred_check
      _
    $region7: #{tpu_custom_call.1} parent=1 // pred_check_branch
      %24 = sbr.rel (0) target = $region9
    $region8: #{tpu_custom_call.1} parent=1 // pred_region
      %s26 = ssub.s32 1152, 1152
      %27 = vsyncadd [#allocation8], %s26
      %s29 = sshll.u32 [#allocation7], 4
      %s30 = int_to_ptr.vmem [resolvable:$true] %s29
      %32 = dma.hbm_to_vmem [thread:$0]  %s2, 1152, %s30, [#allocation8]
    $region9: #{tpu_custom_call.1} parent=1 // pred_fallthru
      _
    // Predicated region
    $region10: #{tpu_custom_call.1} parent=1 // pred_check
      _
    $region11: #{tpu_custom_call.1} parent=1 // pred_check_branch
      %34 = sbr.rel (0) target = $region13
    $region12: #{tpu_custom_call.1} parent=1 // pred_region
      %s36 = ssub.s32 9216, 9216
      %37 = vsyncadd [#allocation8], %s36
      %s38 = sshll.u32 [#allocation9], 4
      %s39 = int_to_ptr.vmem [resolvable:$true] %s38
      %44 = dma.hbm_to_vmem [thread:$0]  %s3, 9216, %s39, [#allocation8], 64, 64, 4
    $region13: #{tpu_custom_call.1} parent=1 // pred_fallthru
      _
    // Predicated region
    $region14: #{tpu_custom_call.1} parent=1 // pred_check
      _
    $region15: #{tpu_custom_call.1} parent=1 // pred_check_branch
      %46 = sbr.rel (0) target = $region17
    $region16: #{tpu_custom_call.1} parent=1 // pred_region
      %47 = dma.done [#allocation5], 1152
    $region17: #{tpu_custom_call.1} parent=1 // pred_fallthru
      _
    // Predicated region
    $region18: #{tpu_custom_call.1} parent=1 // pred_check
      _
    $region19: #{tpu_custom_call.1} parent=1 // pred_check_branch
      %49 = sbr.rel (0) target = $region21
    $region20: #{tpu_custom_call.1} parent=1 // pred_region
      %50 = dma.done [#allocation8], 1152
    $region21: #{tpu_custom_call.1} parent=1 // pred_fallthru
      _
    // Predicated region
    $region22: #{tpu_custom_call.1} parent=1 // pred_check
      _
    $region23: #{tpu_custom_call.1} parent=1 // pred_check_branch
      %52 = sbr.rel (0) target = $region25
    $region24: #{tpu_custom_call.1} parent=1 // pred_region
      %53 = dma.done [#allocation8], 9216
    $region25: #{tpu_custom_call.1} parent=1 // pred_fallthru
      _
    %v55 = vld [vmem:[#allocation4] sm:$0xff]
    %v56 = vld [vmem:[#allocation4 + $0x8] sm:$0xff]
    %v57 = vld [vmem:[#allocation4 + $0x10] sm:$0xff]
    %v58 = vld [vmem:[#allocation4 + $0x18] sm:$0xff]
    %v59 = vld [vmem:[#allocation4 + $0x20] sm:$0xff]
    %v60 = vld [vmem:[#allocation4 + $0x28] sm:$0xff]
    %v61 = vld [vmem:[#allocation4 + $0x30] sm:$0xff]
    %v62 = vld [vmem:[#allocation4 + $0x38] sm:$0xff]
    %v63 = vld [vmem:[#allocation4 + $0x40] sm:$0xff]
    %v64 = vld [vmem:[#allocation7] sm:$0xff]
    %v65 = vld [vmem:[#allocation7 + $0x8] sm:$0xff]
    %v66 = vld [vmem:[#allocation7 + $0x10] sm:$0xff]
    %v67 = vld [vmem:[#allocation7 + $0x18] sm:$0xff]
    %v68 = vld [vmem:[#allocation7 + $0x20] sm:$0xff]
    %v69 = vld [vmem:[#allocation7 + $0x28] sm:$0xff]
    %v70 = vld [vmem:[#allocation7 + $0x30] sm:$0xff]
    %v71 = vld [vmem:[#allocation7 + $0x38] sm:$0xff]
    %v72 = vld [vmem:[#allocation7 + $0x40] sm:$0xff]
    %v73 = vmul.f32 %v55, %v64
    %v74 = vmul.f32 %v56, %v65
    %v75 = vmul.f32 %v57, %v66
    %v76 = vmul.f32 %v58, %v67
    %v77 = vmul.f32 %v59, %v68
    %v78 = vmul.f32 %v60, %v69
    %v79 = vmul.f32 %v61, %v70
    %v80 = vmul.f32 %v62, %v71
    %v81 = vmul.f32 %v63, %v72
    %v82 = vpack.c.bf16 %v73, %v73
    %v83 = vpack.c.bf16 %v74, %v74
    %v84 = vpack.c.bf16 %v75, %v75
    %v85 = vpack.c.bf16 %v76, %v76
    %v86 = vpack.c.bf16 %v77, %v77
    %v87 = vpack.c.bf16 %v78, %v78
    %v88 = vpack.c.bf16 %v79, %v79
    %v89 = vpack.c.bf16 %v80, %v80
    %v90 = vpack.c.bf16 %v81, %v81
    %v91 = vunpack.c.l.bf16 %v82
    %v92 = vunpack.c.l.bf16 %v83
    %v93 = vunpack.c.l.bf16 %v84
    %v94 = vunpack.c.l.bf16 %v85
    %v95 = vunpack.c.l.bf16 %v86
    %v96 = vunpack.c.l.bf16 %v87
    %v97 = vunpack.c.l.bf16 %v88
    %v98 = vunpack.c.l.bf16 %v89
    %v99 = vunpack.c.l.bf16 %v90
    %v100 = vsub.f32 %v73, %v91
    %v101 = vsub.f32 %v74, %v92
    %v102 = vsub.f32 %v75, %v93
    %v103 = vsub.f32 %v76, %v94
    %v104 = vsub.f32 %v77, %v95
    %v105 = vsub.f32 %v78, %v96
    %v106 = vsub.f32 %v79, %v97
    %v107 = vsub.f32 %v80, %v98
    %v108 = vsub.f32 %v81, %v99
    %v109 = vpack.c.bf16 %v100, %v100
    %v110 = vpack.c.bf16 %v101, %v101
    %v111 = vpack.c.bf16 %v102, %v102
    %v112 = vpack.c.bf16 %v103, %v103
    %v113 = vpack.c.bf16 %v104, %v104
    %v114 = vpack.c.bf16 %v105, %v105
    %v115 = vpack.c.bf16 %v106, %v106
    %v116 = vpack.c.bf16 %v107, %v107
    %v117 = vpack.c.bf16 %v108, %v108
    %v118 = vunpack.c.l.bf16 %v109
    %v119 = vunpack.c.l.bf16 %v110
    %v120 = vunpack.c.l.bf16 %v111
    %v121 = vunpack.c.l.bf16 %v112
    %v122 = vunpack.c.l.bf16 %v113
    %v123 = vunpack.c.l.bf16 %v114
    %v124 = vunpack.c.l.bf16 %v115
    %v125 = vunpack.c.l.bf16 %v116
    %v126 = vunpack.c.l.bf16 %v117
    %v127 = vsub.f32 %v100, %v118
    %v128 = vsub.f32 %v101, %v119
    %v129 = vsub.f32 %v102, %v120
    %v130 = vsub.f32 %v103, %v121
    %v131 = vsub.f32 %v104, %v122
    %v132 = vsub.f32 %v105, %v123
    %v133 = vsub.f32 %v106, %v124
    %v134 = vsub.f32 %v107, %v125
    %v135 = vsub.f32 %v108, %v126
    %v136 = vpack.c.bf16 %v127, %v127
    %v137 = vpack.c.bf16 %v128, %v128
    %v138 = vpack.c.bf16 %v129, %v129
    %v139 = vpack.c.bf16 %v130, %v130
    %v140 = vpack.c.bf16 %v131, %v131
    %v141 = vpack.c.bf16 %v132, %v132
    %v142 = vpack.c.bf16 %v133, %v133
    %v143 = vpack.c.bf16 %v134, %v134
    %v144 = vpack.c.bf16 %v135, %v135
    %v145 = vld [vmem:[#allocation9] sm:$0xf]
    %v146 = vld [vmem:[#allocation9 + $0x4] sm:$0xf]
    %v147 = vld [vmem:[#allocation9 + $0x8] sm:$0xf]
    %v148 = vld [vmem:[#allocation9 + $0xc] sm:$0xf]
    %v149 = vld [vmem:[#allocation9 + $0x10] sm:$0xf]
    %v150 = vld [vmem:[#allocation9 + $0x14] sm:$0xf]
    %v151 = vld [vmem:[#allocation9 + $0x18] sm:$0xf]
    %v152 = vld [vmem:[#allocation9 + $0x1c] sm:$0xf]
    %v153 = vld [vmem:[#allocation9 + $0x20] sm:$0xf]
    %v154 = vld [vmem:[#allocation9 + $0x24] sm:$0xf]
    %v155 = vld [vmem:[#allocation9 + $0x28] sm:$0xf]
    %v156 = vld [vmem:[#allocation9 + $0x2c] sm:$0xf]
    %v157 = vld [vmem:[#allocation9 + $0x30] sm:$0xf]
    %v158 = vld [vmem:[#allocation9 + $0x34] sm:$0xf]
    %v159 = vld [vmem:[#allocation9 + $0x38] sm:$0xf]
    %v160 = vld [vmem:[#allocation9 + $0x3c] sm:$0xf]
    %v161 = vld [vmem:[#allocation9 + $0x40] sm:$0xf]
    %v162 = vld [vmem:[#allocation9 + $0x44] sm:$0xf]
    %v163 = vld [vmem:[#allocation9 + $0x48] sm:$0xf]
    %v164 = vld [vmem:[#allocation9 + $0x4c] sm:$0xf]
    %v165 = vld [vmem:[#allocation9 + $0x50] sm:$0xf]
    %v166 = vld [vmem:[#allocation9 + $0x54] sm:$0xf]
    %v167 = vld [vmem:[#allocation9 + $0x58] sm:$0xf]
    %v168 = vld [vmem:[#allocation9 + $0x5c] sm:$0xf]
    %v169 = vld [vmem:[#allocation9 + $0x60] sm:$0xf]
    %v170 = vld [vmem:[#allocation9 + $0x64] sm:$0xf]
    %v171 = vld [vmem:[#allocation9 + $0x68] sm:$0xf]
    %v172 = vld [vmem:[#allocation9 + $0x6c] sm:$0xf]
    %v173 = vld [vmem:[#allocation9 + $0x70] sm:$0xf]
    %v174 = vld [vmem:[#allocation9 + $0x74] sm:$0xf]
    %v175 = vld [vmem:[#allocation9 + $0x78] sm:$0xf]
    %v176 = vld [vmem:[#allocation9 + $0x7c] sm:$0xf]
    %v177 = vld [vmem:[#allocation9 + $0x80] sm:$0xf]
    %v178 = vld [vmem:[#allocation9 + $0x84] sm:$0xf]
    %v179 = vld [vmem:[#allocation9 + $0x88] sm:$0xf]
    %v180 = vld [vmem:[#allocation9 + $0x8c] sm:$0xf]
    %v181 = vld [vmem:[#allocation9 + $0x90] sm:$0xf]
    %v182 = vld [vmem:[#allocation9 + $0x94] sm:$0xf]
    %v183 = vld [vmem:[#allocation9 + $0x98] sm:$0xf]
    %v184 = vld [vmem:[#allocation9 + $0x9c] sm:$0xf]
    %v185 = vld [vmem:[#allocation9 + $0xa0] sm:$0xf]
    %v186 = vld [vmem:[#allocation9 + $0xa4] sm:$0xf]
    %v187 = vld [vmem:[#allocation9 + $0xa8] sm:$0xf]
    %v188 = vld [vmem:[#allocation9 + $0xac] sm:$0xf]
    %v189 = vld [vmem:[#allocation9 + $0xb0] sm:$0xf]
    %v190 = vld [vmem:[#allocation9 + $0xb4] sm:$0xf]
    %v191 = vld [vmem:[#allocation9 + $0xb8] sm:$0xf]
    %v192 = vld [vmem:[#allocation9 + $0xbc] sm:$0xf]
    %v193 = vld [vmem:[#allocation9 + $0xc0] sm:$0xf]
    %v194 = vld [vmem:[#allocation9 + $0xc4] sm:$0xf]
    %v195 = vld [vmem:[#allocation9 + $0xc8] sm:$0xf]
    %v196 = vld [vmem:[#allocation9 + $0xcc] sm:$0xf]
    %v197 = vld [vmem:[#allocation9 + $0xd0] sm:$0xf]
    %v198 = vld [vmem:[#allocation9 + $0xd4] sm:$0xf]
    %v199 = vld [vmem:[#allocation9 + $0xd8] sm:$0xf]
    %v200 = vld [vmem:[#allocation9 + $0xdc] sm:$0xf]
    %v201 = vld [vmem:[#allocation9 + $0xe0] sm:$0xf]
    %v202 = vld [vmem:[#allocation9 + $0xe4] sm:$0xf]
    %v203 = vld [vmem:[#allocation9 + $0xe8] sm:$0xf]
    %v204 = vld [vmem:[#allocation9 + $0xec] sm:$0xf]
    %v205 = vld [vmem:[#allocation9 + $0xf0] sm:$0xf]
    %v206 = vld [vmem:[#allocation9 + $0xf4] sm:$0xf]
    %v207 = vld [vmem:[#allocation9 + $0xf8] sm:$0xf]
    %v208 = vld [vmem:[#allocation9 + $0xfc] sm:$0xf]
    %v209 = vld [vmem:[#allocation9 + $0x100] sm:$0xf]
    %v210 = vld [vmem:[#allocation9 + $0x104] sm:$0xf]
    %v211 = vld [vmem:[#allocation9 + $0x108] sm:$0xf]
    %v212 = vld [vmem:[#allocation9 + $0x10c] sm:$0xf]
    %v213 = vld [vmem:[#allocation9 + $0x110] sm:$0xf]
    %v214 = vld [vmem:[#allocation9 + $0x114] sm:$0xf]
    %v215 = vld [vmem:[#allocation9 + $0x118] sm:$0xf]
    %v216 = vld [vmem:[#allocation9 + $0x11c] sm:$0xf]
    %v217 = vld [vmem:[#allocation9 + $0x120] sm:$0xf]
    %v218 = vld [vmem:[#allocation9 + $0x124] sm:$0xf]
    %v219 = vld [vmem:[#allocation9 + $0x128] sm:$0xf]
    %v220 = vld [vmem:[#allocation9 + $0x12c] sm:$0xf]
    %v221 = vld [vmem:[#allocation9 + $0x130] sm:$0xf]
    %v222 = vld [vmem:[#allocation9 + $0x134] sm:$0xf]
    %v223 = vld [vmem:[#allocation9 + $0x138] sm:$0xf]
    %v224 = vld [vmem:[#allocation9 + $0x13c] sm:$0xf]
    %v225 = vld [vmem:[#allocation9 + $0x140] sm:$0xf]
    %v226 = vld [vmem:[#allocation9 + $0x144] sm:$0xf]
    %v227 = vld [vmem:[#allocation9 + $0x148] sm:$0xf]
    %v228 = vld [vmem:[#allocation9 + $0x14c] sm:$0xf]
    %v229 = vld [vmem:[#allocation9 + $0x150] sm:$0xf]
    %v230 = vld [vmem:[#allocation9 + $0x154] sm:$0xf]
    %v231 = vld [vmem:[#allocation9 + $0x158] sm:$0xf]
    %v232 = vld [vmem:[#allocation9 + $0x15c] sm:$0xf]
    %v233 = vld [vmem:[#allocation9 + $0x160] sm:$0xf]
    %v234 = vld [vmem:[#allocation9 + $0x164] sm:$0xf]
    %v235 = vld [vmem:[#allocation9 + $0x168] sm:$0xf]
    %v236 = vld [vmem:[#allocation9 + $0x16c] sm:$0xf]
    %v237 = vld [vmem:[#allocation9 + $0x170] sm:$0xf]
    %v238 = vld [vmem:[#allocation9 + $0x174] sm:$0xf]
    %v239 = vld [vmem:[#allocation9 + $0x178] sm:$0xf]
    %v240 = vld [vmem:[#allocation9 + $0x17c] sm:$0xf]
    %v241 = vld [vmem:[#allocation9 + $0x180] sm:$0xf]
    %v242 = vld [vmem:[#allocation9 + $0x184] sm:$0xf]
    %v243 = vld [vmem:[#allocation9 + $0x188] sm:$0xf]
    %v244 = vld [vmem:[#allocation9 + $0x18c] sm:$0xf]
    %v245 = vld [vmem:[#allocation9 + $0x190] sm:$0xf]
    %v246 = vld [vmem:[#allocation9 + $0x194] sm:$0xf]
    %v247 = vld [vmem:[#allocation9 + $0x198] sm:$0xf]
    %v248 = vld [vmem:[#allocation9 + $0x19c] sm:$0xf]
    %v249 = vld [vmem:[#allocation9 + $0x1a0] sm:$0xf]
    %v250 = vld [vmem:[#allocation9 + $0x1a4] sm:$0xf]
    %v251 = vld [vmem:[#allocation9 + $0x1a8] sm:$0xf]
    %v252 = vld [vmem:[#allocation9 + $0x1ac] sm:$0xf]
    %v253 = vld [vmem:[#allocation9 + $0x1b0] sm:$0xf]
    %v254 = vld [vmem:[#allocation9 + $0x1b4] sm:$0xf]
    %v255 = vld [vmem:[#allocation9 + $0x1b8] sm:$0xf]
    %v256 = vld [vmem:[#allocation9 + $0x1bc] sm:$0xf]
    %v257 = vld [vmem:[#allocation9 + $0x1c0] sm:$0xf]
    %v258 = vld [vmem:[#allocation9 + $0x1c4] sm:$0xf]
    %v259 = vld [vmem:[#allocation9 + $0x1c8] sm:$0xf]
    %v260 = vld [vmem:[#allocation9 + $0x1cc] sm:$0xf]
    %v261 = vld [vmem:[#allocation9 + $0x1d0] sm:$0xf]
    %v262 = vld [vmem:[#allocation9 + $0x1d4] sm:$0xf]
    %v263 = vld [vmem:[#allocation9 + $0x1d8] sm:$0xf]
    %v264 = vld [vmem:[#allocation9 + $0x1dc] sm:$0xf]
    %v265 = vld [vmem:[#allocation9 + $0x1e0] sm:$0xf]
    %v266 = vld [vmem:[#allocation9 + $0x1e4] sm:$0xf]
    %v267 = vld [vmem:[#allocation9 + $0x1e8] sm:$0xf]
    %v268 = vld [vmem:[#allocation9 + $0x1ec] sm:$0xf]
    %v269 = vld [vmem:[#allocation9 + $0x1f0] sm:$0xf]
    %v270 = vld [vmem:[#allocation9 + $0x1f4] sm:$0xf]
    %v271 = vld [vmem:[#allocation9 + $0x1f8] sm:$0xf]
    %v272 = vld [vmem:[#allocation9 + $0x1fc] sm:$0xf]
    %v273 = vld [vmem:[#allocation9 + $0x200] sm:$0xf]
    %v274 = vld [vmem:[#allocation9 + $0x204] sm:$0xf]
    %v275 = vld [vmem:[#allocation9 + $0x208] sm:$0xf]
    %v276 = vld [vmem:[#allocation9 + $0x20c] sm:$0xf]
    %v277 = vld [vmem:[#allocation9 + $0x210] sm:$0xf]
    %v278 = vld [vmem:[#allocation9 + $0x214] sm:$0xf]
    %v279 = vld [vmem:[#allocation9 + $0x218] sm:$0xf]
    %v280 = vld [vmem:[#allocation9 + $0x21c] sm:$0xf]
    %v281 = vld [vmem:[#allocation9 + $0x220] sm:$0xf]
    %v282 = vld [vmem:[#allocation9 + $0x224] sm:$0xf]
    %v283 = vld [vmem:[#allocation9 + $0x228] sm:$0xf]
    %v284 = vld [vmem:[#allocation9 + $0x22c] sm:$0xf]
    %v285 = vld [vmem:[#allocation9 + $0x230] sm:$0xf]
    %v286 = vld [vmem:[#allocation9 + $0x234] sm:$0xf]
    %v287 = vld [vmem:[#allocation9 + $0x238] sm:$0xf]
    %v288 = vld [vmem:[#allocation9 + $0x23c] sm:$0xf]
    %v433 = vunpack.c.l.b16 %v145
    %v434 = vunpack.c.l.b16 %v146
    %v435 = vunpack.c.l.b16 %v147
    %v436 = vunpack.c.l.b16 %v148
    %v437 = vunpack.c.l.b16 %v149
    %v438 = vunpack.c.l.b16 %v150
    %v439 = vunpack.c.l.b16 %v151
    %v440 = vunpack.c.l.b16 %v152
    %v441 = vunpack.c.l.b16 %v153
    %v442 = vunpack.c.l.b16 %v154
    %v443 = vunpack.c.l.b16 %v155
    %v444 = vunpack.c.l.b16 %v156
    %v445 = vunpack.c.l.b16 %v157
    %v446 = vunpack.c.l.b16 %v158
    %v447 = vunpack.c.l.b16 %v159
    %v448 = vunpack.c.l.b16 %v160
    %v449 = vunpack.c.l.b16 %v161
    %v450 = vunpack.c.l.b16 %v162
    %v451 = vunpack.c.l.b16 %v163
    %v452 = vunpack.c.l.b16 %v164
    %v453 = vunpack.c.l.b16 %v165
    %v454 = vunpack.c.l.b16 %v166
    %v455 = vunpack.c.l.b16 %v167
    %v456 = vunpack.c.l.b16 %v168
    %v457 = vunpack.c.l.b16 %v169
    %v458 = vunpack.c.l.b16 %v170
    %v459 = vunpack.c.l.b16 %v171
    %v460 = vunpack.c.l.b16 %v172
    %v461 = vunpack.c.l.b16 %v173
    %v462 = vunpack.c.l.b16 %v174
    %v463 = vunpack.c.l.b16 %v175
    %v464 = vunpack.c.l.b16 %v176
    %v465 = vunpack.c.l.b16 %v177
    %v466 = vunpack.c.l.b16 %v178
    %v467 = vunpack.c.l.b16 %v179
    %v468 = vunpack.c.l.b16 %v180
    %v469 = vunpack.c.l.b16 %v181
    %v470 = vunpack.c.l.b16 %v182
    %v471 = vunpack.c.l.b16 %v183
    %v472 = vunpack.c.l.b16 %v184
    %v473 = vunpack.c.l.b16 %v185
    %v474 = vunpack.c.l.b16 %v186
    %v475 = vunpack.c.l.b16 %v187
    %v476 = vunpack.c.l.b16 %v188
    %v477 = vunpack.c.l.b16 %v189
    %v478 = vunpack.c.l.b16 %v190
    %v479 = vunpack.c.l.b16 %v191
    %v480 = vunpack.c.l.b16 %v192
    %v481 = vunpack.c.l.b16 %v193
    %v482 = vunpack.c.l.b16 %v194
    %v483 = vunpack.c.l.b16 %v195
    %v484 = vunpack.c.l.b16 %v196
    %v485 = vunpack.c.l.b16 %v197
    %v486 = vunpack.c.l.b16 %v198
    %v487 = vunpack.c.l.b16 %v199
    %v488 = vunpack.c.l.b16 %v200
    %v489 = vunpack.c.l.b16 %v201
    %v490 = vunpack.c.l.b16 %v202
    %v491 = vunpack.c.l.b16 %v203
    %v492 = vunpack.c.l.b16 %v204
    %v493 = vunpack.c.l.b16 %v205
    %v494 = vunpack.c.l.b16 %v206
    %v495 = vunpack.c.l.b16 %v207
    %v496 = vunpack.c.l.b16 %v208
    %v497 = vunpack.c.l.b16 %v209
    %v498 = vunpack.c.l.b16 %v210
    %v499 = vunpack.c.l.b16 %v211
    %v500 = vunpack.c.l.b16 %v212
    %v501 = vunpack.c.l.b16 %v213
    %v502 = vunpack.c.l.b16 %v214
    %v503 = vunpack.c.l.b16 %v215
    %v504 = vunpack.c.l.b16 %v216
    %v505 = vunpack.c.l.b16 %v217
    %v506 = vunpack.c.l.b16 %v218
    %v507 = vunpack.c.l.b16 %v219
    %v508 = vunpack.c.l.b16 %v220
    %v509 = vunpack.c.l.b16 %v221
    %v510 = vunpack.c.l.b16 %v222
    %v511 = vunpack.c.l.b16 %v223
    %v512 = vunpack.c.l.b16 %v224
    %v513 = vunpack.c.l.b16 %v225
    %v514 = vunpack.c.l.b16 %v226
    %v515 = vunpack.c.l.b16 %v227
    %v516 = vunpack.c.l.b16 %v228
    %v517 = vunpack.c.l.b16 %v229
    %v518 = vunpack.c.l.b16 %v230
    %v519 = vunpack.c.l.b16 %v231
    %v520 = vunpack.c.l.b16 %v232
    %v521 = vunpack.c.l.b16 %v233
    %v522 = vunpack.c.l.b16 %v234
    %v523 = vunpack.c.l.b16 %v235
    %v524 = vunpack.c.l.b16 %v236
    %v525 = vunpack.c.l.b16 %v237
    %v526 = vunpack.c.l.b16 %v238
    %v527 = vunpack.c.l.b16 %v239
    %v528 = vunpack.c.l.b16 %v240
    %v529 = vunpack.c.l.b16 %v241
    %v530 = vunpack.c.l.b16 %v242
    %v531 = vunpack.c.l.b16 %v243
    %v532 = vunpack.c.l.b16 %v244
    %v533 = vunpack.c.l.b16 %v245
    %v534 = vunpack.c.l.b16 %v246
    %v535 = vunpack.c.l.b16 %v247
    %v536 = vunpack.c.l.b16 %v248
    %v537 = vunpack.c.l.b16 %v249
    %v538 = vunpack.c.l.b16 %v250
    %v539 = vunpack.c.l.b16 %v251
    %v540 = vunpack.c.l.b16 %v252
    %v541 = vunpack.c.l.b16 %v253
    %v542 = vunpack.c.l.b16 %v254
    %v543 = vunpack.c.l.b16 %v255
    %v544 = vunpack.c.l.b16 %v256
    %v545 = vunpack.c.l.b16 %v257
    %v546 = vunpack.c.l.b16 %v258
    %v547 = vunpack.c.l.b16 %v259
    %v548 = vunpack.c.l.b16 %v260
    %v549 = vunpack.c.l.b16 %v261
    %v550 = vunpack.c.l.b16 %v262
    %v551 = vunpack.c.l.b16 %v263
    %v552 = vunpack.c.l.b16 %v264
    %v553 = vunpack.c.l.b16 %v265
    %v554 = vunpack.c.l.b16 %v266
    %v555 = vunpack.c.l.b16 %v267
    %v556 = vunpack.c.l.b16 %v268
    %v557 = vunpack.c.l.b16 %v269
    %v558 = vunpack.c.l.b16 %v270
    %v559 = vunpack.c.l.b16 %v271
    %v560 = vunpack.c.l.b16 %v272
    %v561 = vunpack.c.l.b16 %v273
    %v562 = vunpack.c.l.b16 %v274
    %v563 = vunpack.c.l.b16 %v275
    %v564 = vunpack.c.l.b16 %v276
    %v565 = vunpack.c.l.b16 %v277
    %v566 = vunpack.c.l.b16 %v278
    %v567 = vunpack.c.l.b16 %v279
    %v568 = vunpack.c.l.b16 %v280
    %v569 = vunpack.c.l.b16 %v281
    %v570 = vunpack.c.l.b16 %v282
    %v571 = vunpack.c.l.b16 %v283
    %v572 = vunpack.c.l.b16 %v284
    %v573 = vunpack.c.l.b16 %v285
    %v574 = vunpack.c.l.b16 %v286
    %v575 = vunpack.c.l.b16 %v287
    %v576 = vunpack.c.l.b16 %v288
    %v577 = vpack.c.b16 %v434, %v433
    %v578 = vpack.c.b16 %v436, %v435
    %v579 = vpack.c.b16 %v438, %v437
    %v580 = vpack.c.b16 %v440, %v439
    %v581 = vpack.c.b16 %v442, %v441
    %v582 = vpack.c.b16 %v444, %v443
    %v583 = vpack.c.b16 %v446, %v445
    %v584 = vpack.c.b16 %v448, %v447
    %v585 = vpack.c.b16 %v450, %v449
    %v586 = vpack.c.b16 %v452, %v451
    %v587 = vpack.c.b16 %v454, %v453
    %v588 = vpack.c.b16 %v456, %v455
    %v589 = vpack.c.b16 %v458, %v457
    %v590 = vpack.c.b16 %v460, %v459
    %v591 = vpack.c.b16 %v462, %v461
    %v592 = vpack.c.b16 %v464, %v463
    %v593 = vpack.c.b16 %v466, %v465
    %v594 = vpack.c.b16 %v468, %v467
    %v595 = vpack.c.b16 %v470, %v469
    %v596 = vpack.c.b16 %v472, %v471
    %v597 = vpack.c.b16 %v474, %v473
    %v598 = vpack.c.b16 %v476, %v475
    %v599 = vpack.c.b16 %v478, %v477
    %v600 = vpack.c.b16 %v480, %v479
    %v601 = vpack.c.b16 %v482, %v481
    %v602 = vpack.c.b16 %v484, %v483
    %v603 = vpack.c.b16 %v486, %v485
    %v604 = vpack.c.b16 %v488, %v487
    %v605 = vpack.c.b16 %v490, %v489
    %v606 = vpack.c.b16 %v492, %v491
    %v607 = vpack.c.b16 %v494, %v493
    %v608 = vpack.c.b16 %v496, %v495
    %v609 = vpack.c.b16 %v498, %v497
    %v610 = vpack.c.b16 %v500, %v499
    %v611 = vpack.c.b16 %v502, %v501
    %v612 = vpack.c.b16 %v504, %v503
    %v613 = vpack.c.b16 %v506, %v505
    %v614 = vpack.c.b16 %v508, %v507
    %v615 = vpack.c.b16 %v510, %v509
    %v616 = vpack.c.b16 %v512, %v511
    %v617 = vpack.c.b16 %v514, %v513
    %v618 = vpack.c.b16 %v516, %v515
    %v619 = vpack.c.b16 %v518, %v517
    %v620 = vpack.c.b16 %v520, %v519
    %v621 = vpack.c.b16 %v522, %v521
    %v622 = vpack.c.b16 %v524, %v523
    %v623 = vpack.c.b16 %v526, %v525
    %v624 = vpack.c.b16 %v528, %v527
    %v625 = vpack.c.b16 %v530, %v529
    %v626 = vpack.c.b16 %v532, %v531
    %v627 = vpack.c.b16 %v534, %v533
    %v628 = vpack.c.b16 %v536, %v535
    %v629 = vpack.c.b16 %v538, %v537
    %v630 = vpack.c.b16 %v540, %v539
    %v631 = vpack.c.b16 %v542, %v541
    %v632 = vpack.c.b16 %v544, %v543
    %v633 = vpack.c.b16 %v546, %v545
    %v634 = vpack.c.b16 %v548, %v547
    %v635 = vpack.c.b16 %v550, %v549
    %v636 = vpack.c.b16 %v552, %v551
    %v637 = vpack.c.b16 %v554, %v553
    %v638 = vpack.c.b16 %v556, %v555
    %v639 = vpack.c.b16 %v558, %v557
    %v640 = vpack.c.b16 %v560, %v559
    %v641 = vpack.c.b16 %v562, %v561
    %v642 = vpack.c.b16 %v564, %v563
    %v643 = vpack.c.b16 %v566, %v565
    %v644 = vpack.c.b16 %v568, %v567
    %v645 = vpack.c.b16 %v570, %v569
    %v646 = vpack.c.b16 %v572, %v571
    %v647 = vpack.c.b16 %v574, %v573
    %v648 = vpack.c.b16 %v576, %v575
    %721 = vmatprep.subr.bf16.mxu0 0
    %722 = vmatpush1.bf16.msra.mxu0 %v584
    %723 = vmatprep.subr.bf16.mxu0 0
    %724 = vmatpush1.bf16.msra.mxu0 %v583
    %725 = vmatprep.subr.bf16.mxu0 0
    %726 = vmatpush1.bf16.msra.mxu0 %v582
    %727 = vmatprep.subr.bf16.mxu0 0
    %728 = vmatpush1.bf16.msra.mxu0 %v581
    %729 = vmatprep.subr.bf16.mxu0 0
    %730 = vmatpush1.bf16.msra.mxu0 %v580
    %731 = vmatprep.subr.bf16.mxu0 0
    %732 = vmatpush1.bf16.msra.mxu0 %v579
    %733 = vmatprep.subr.bf16.mxu0 0
    %734 = vmatpush1.bf16.msra.mxu0 %v578
    %735 = vmatprep.subr.bf16.mxu0 0
    %736 = vmatpush1.bf16.msra.mxu0 %v577
    %737 = vmatprep.subr.bf16.mxu0 0
    %738 = vmatpush2.bf16.msra.mxu0 %v592
    %739 = vmatprep.subr.bf16.mxu0 0
    %740 = vmatpush2.bf16.msra.mxu0 %v591
    %741 = vmatprep.subr.bf16.mxu0 0
    %742 = vmatpush2.bf16.msra.mxu0 %v590
    %743 = vmatprep.subr.bf16.mxu0 0
    %744 = vmatpush2.bf16.msra.mxu0 %v589
    %745 = vmatprep.subr.bf16.mxu0 0
    %746 = vmatpush2.bf16.msra.mxu0 %v588
    %747 = vmatprep.subr.bf16.mxu0 0
    %748 = vmatpush2.bf16.msra.mxu0 %v587
    %749 = vmatprep.subr.bf16.mxu0 0
    %750 = vmatpush2.bf16.msra.mxu0 %v586
    %751 = vmatprep.subr.bf16.mxu0 0
    %752 = vmatpush2.bf16.msra.mxu0 %v585
    %753 = vmatprep.mubr.bf16.mxu0 %v110
    %754 = vmatmul.mubr.bf16.gmra.mxu0 %v109
    %v755 = vpop.f32.mrf.mxu0
    %v756 = vadd.f32 0.0, %v755
    %v757 = vpop.f32.mrf.mxu0
    %v758 = vpop.f32.mrf.mxu0
    %v759 = vpop.f32.mrf.mxu0
    %760 = vdwg.mxu0
    %761 = vmatprep.subr.bf16.mxu0 0
    %762 = vmatpush1.bf16.msra.mxu0 %v600
    %763 = vmatprep.subr.bf16.mxu0 0
    %764 = vmatpush1.bf16.msra.mxu0 %v599
    %765 = vmatprep.subr.bf16.mxu0 0
    %766 = vmatpush1.bf16.msra.mxu0 %v598
    %767 = vmatprep.subr.bf16.mxu0 0
    %768 = vmatpush1.bf16.msra.mxu0 %v597
    %769 = vmatprep.subr.bf16.mxu0 0
    %770 = vmatpush1.bf16.msra.mxu0 %v596
    %771 = vmatprep.subr.bf16.mxu0 0
    %772 = vmatpush1.bf16.msra.mxu0 %v595
    %773 = vmatprep.subr.bf16.mxu0 0
    %774 = vmatpush1.bf16.msra.mxu0 %v594
    %775 = vmatprep.subr.bf16.mxu0 0
    %776 = vmatpush1.bf16.msra.mxu0 %v593
    %777 = vmatprep.subr.bf16.mxu0 0
    %778 = vmatpush2.bf16.msra.mxu0 %v608
    %779 = vmatprep.subr.bf16.mxu0 0
    %780 = vmatpush2.bf16.msra.mxu0 %v607
    %781 = vmatprep.subr.bf16.mxu0 0
    %782 = vmatpush2.bf16.msra.mxu0 %v606
    %783 = vmatprep.subr.bf16.mxu0 0
    %784 = vmatpush2.bf16.msra.mxu0 %v605
    %785 = vmatprep.subr.bf16.mxu0 0
    %786 = vmatpush2.bf16.msra.mxu0 %v604
    %787 = vmatprep.subr.bf16.mxu0 0
    %788 = vmatpush2.bf16.msra.mxu0 %v603
    %789 = vmatprep.subr.bf16.mxu0 0
    %790 = vmatpush2.bf16.msra.mxu0 %v602
    %791 = vmatprep.subr.bf16.mxu0 0
    %792 = vmatpush2.bf16.msra.mxu0 %v601
    %793 = vmatprep.mubr.bf16.mxu0 %v112
    %794 = vmatmul.mubr.bf16.gmra.mxu0 %v111
    %v795 = vpop.f32.mrf.mxu0
    %v796 = vadd.f32 %v756, %v795
    %v797 = vpop.f32.mrf.mxu0
    %v798 = vpop.f32.mrf.mxu0
    %v799 = vpop.f32.mrf.mxu0
    %800 = vdwg.mxu0
    %801 = vmatprep.subr.bf16.mxu0 0
    %802 = vmatpush1.bf16.msra.mxu0 %v616
    %803 = vmatprep.subr.bf16.mxu0 0
    %804 = vmatpush1.bf16.msra.mxu0 %v615
    %805 = vmatprep.subr.bf16.mxu0 0
    %806 = vmatpush1.bf16.msra.mxu0 %v614
    %807 = vmatprep.subr.bf16.mxu0 0
    %808 = vmatpush1.bf16.msra.mxu0 %v613
    %809 = vmatprep.subr.bf16.mxu0 0
    %810 = vmatpush1.bf16.msra.mxu0 %v612
    %811 = vmatprep.subr.bf16.mxu0 0
    %812 = vmatpush1.bf16.msra.mxu0 %v611
    %813 = vmatprep.subr.bf16.mxu0 0
    %814 = vmatpush1.bf16.msra.mxu0 %v610
    %815 = vmatprep.subr.bf16.mxu0 0
    %816 = vmatpush1.bf16.msra.mxu0 %v609
    %817 = vmatprep.subr.bf16.mxu0 0
    %818 = vmatpush2.bf16.msra.mxu0 %v624
    %819 = vmatprep.subr.bf16.mxu0 0
    %820 = vmatpush2.bf16.msra.mxu0 %v623
    %821 = vmatprep.subr.bf16.mxu0 0
    %822 = vmatpush2.bf16.msra.mxu0 %v622
    %823 = vmatprep.subr.bf16.mxu0 0
    %824 = vmatpush2.bf16.msra.mxu0 %v621
    %825 = vmatprep.subr.bf16.mxu0 0
    %826 = vmatpush2.bf16.msra.mxu0 %v620
    %827 = vmatprep.subr.bf16.mxu0 0
    %828 = vmatpush2.bf16.msra.mxu0 %v619
    %829 = vmatprep.subr.bf16.mxu0 0
    %830 = vmatpush2.bf16.msra.mxu0 %v618
    %831 = vmatprep.subr.bf16.mxu0 0
    %832 = vmatpush2.bf16.msra.mxu0 %v617
    %833 = vmatprep.mubr.bf16.mxu0 %v114
    %834 = vmatmul.mubr.bf16.gmra.mxu0 %v113
    %v835 = vpop.f32.mrf.mxu0
    %v836 = vadd.f32 %v796, %v835
    %v837 = vpop.f32.mrf.mxu0
    %v838 = vpop.f32.mrf.mxu0
    %v839 = vpop.f32.mrf.mxu0
    %840 = vdwg.mxu0
    %841 = vmatprep.subr.bf16.mxu0 0
    %842 = vmatpush1.bf16.msra.mxu0 %v632
    %843 = vmatprep.subr.bf16.mxu0 0
    %844 = vmatpush1.bf16.msra.mxu0 %v631
    %845 = vmatprep.subr.bf16.mxu0 0
    %846 = vmatpush1.bf16.msra.mxu0 %v630
    %847 = vmatprep.subr.bf16.mxu0 0
    %848 = vmatpush1.bf16.msra.mxu0 %v629
    %849 = vmatprep.subr.bf16.mxu0 0
    %850 = vmatpush1.bf16.msra.mxu0 %v628
    %851 = vmatprep.subr.bf16.mxu0 0
    %852 = vmatpush1.bf16.msra.mxu0 %v627
    %853 = vmatprep.subr.bf16.mxu0 0
    %854 = vmatpush1.bf16.msra.mxu0 %v626
    %855 = vmatprep.subr.bf16.mxu0 0
    %856 = vmatpush1.bf16.msra.mxu0 %v625
    %857 = vmatprep.subr.bf16.mxu0 0
    %858 = vmatpush2.bf16.msra.mxu0 %v640
    %859 = vmatprep.subr.bf16.mxu0 0
    %860 = vmatpush2.bf16.msra.mxu0 %v639
    %861 = vmatprep.subr.bf16.mxu0 0
    %862 = vmatpush2.bf16.msra.mxu0 %v638
    %863 = vmatprep.subr.bf16.mxu0 0
    %864 = vmatpush2.bf16.msra.mxu0 %v637
    %865 = vmatprep.subr.bf16.mxu0 0
    %866 = vmatpush2.bf16.msra.mxu0 %v636
    %867 = vmatprep.subr.bf16.mxu0 0
    %868 = vmatpush2.bf16.msra.mxu0 %v635
    %869 = vmatprep.subr.bf16.mxu0 0
    %870 = vmatpush2.bf16.msra.mxu0 %v634
    %871 = vmatprep.subr.bf16.mxu0 0
    %872 = vmatpush2.bf16.msra.mxu0 %v633
    %873 = vmatprep.mubr.bf16.mxu0 %v116
    %874 = vmatmul.mubr.bf16.gmra.mxu0 %v115
    %v875 = vpop.f32.mrf.mxu0
    %v876 = vadd.f32 %v836, %v875
    %v877 = vpop.f32.mrf.mxu0
    %v878 = vpop.f32.mrf.mxu0
    %v879 = vpop.f32.mrf.mxu0
    %880 = vdwg.mxu0
    %881 = vmatprep.subr.bf16.mxu0 0
    %882 = vmatpush1.bf16.msra.mxu0 %v648
    %883 = vmatprep.subr.bf16.mxu0 0
    %884 = vmatpush1.bf16.msra.mxu0 %v647
    %885 = vmatprep.subr.bf16.mxu0 0
    %886 = vmatpush1.bf16.msra.mxu0 %v646
    %887 = vmatprep.subr.bf16.mxu0 0
    %888 = vmatpush1.bf16.msra.mxu0 %v645
    %889 = vmatprep.subr.bf16.mxu0 0
    %890 = vmatpush1.bf16.msra.mxu0 %v644
    %891 = vmatprep.subr.bf16.mxu0 0
    %892 = vmatpush1.bf16.msra.mxu0 %v643
    %893 = vmatprep.subr.bf16.mxu0 0
    %894 = vmatpush1.bf16.msra.mxu0 %v642
    %895 = vmatprep.subr.bf16.mxu0 0
    %896 = vmatpush1.bf16.msra.mxu0 %v641
    %897 = vmatprep.subr.bf16.mxu0 0
    %898 = vmatpush2.bf16.msra.mxu0 0
    %899 = vmatprep.subr.bf16.mxu0 0
    %900 = vmatpush2.bf16.msra.mxu0 0
    %901 = vmatprep.subr.bf16.mxu0 0
    %902 = vmatpush2.bf16.msra.mxu0 0
    %903 = vmatprep.subr.bf16.mxu0 0
    %904 = vmatpush2.bf16.msra.mxu0 0
    %905 = vmatprep.subr.bf16.mxu0 0
    %906 = vmatpush2.bf16.msra.mxu0 0
    %907 = vmatprep.subr.bf16.mxu0 0
    %908 = vmatpush2.bf16.msra.mxu0 0
    %909 = vmatprep.subr.bf16.mxu0 0
    %910 = vmatpush2.bf16.msra.mxu0 0
    %911 = vmatprep.subr.bf16.mxu0 0
    %912 = vmatpush2.bf16.msra.mxu0 0
    %913 = vmatprep.mubr.bf16.mxu0 0
    %914 = vmatmul.mubr.bf16.gmra.mxu0 %v117
    %v915 = vpop.f32.mrf.mxu0
    %v916 = vadd.f32 %v876, %v915
    %v917 = vpop.f32.mrf.mxu0
    %v918 = vpop.f32.mrf.mxu0
    %v919 = vpop.f32.mrf.mxu0
    %920 = vdwg.mxu0
    %921 = vmatprep.subr.bf16.mxu0 0
    %922 = vmatpush1.bf16.msra.mxu0 %v584
    %923 = vmatprep.subr.bf16.mxu0 0
    %924 = vmatpush1.bf16.msra.mxu0 %v583
    %925 = vmatprep.subr.bf16.mxu0 0
    %926 = vmatpush1.bf16.msra.mxu0 %v582
    %927 = vmatprep.subr.bf16.mxu0 0
    %928 = vmatpush1.bf16.msra.mxu0 %v581
    %929 = vmatprep.subr.bf16.mxu0 0
    %930 = vmatpush1.bf16.msra.mxu0 %v580
    %931 = vmatprep.subr.bf16.mxu0 0
    %932 = vmatpush1.bf16.msra.mxu0 %v579
    %933 = vmatprep.subr.bf16.mxu0 0
    %934 = vmatpush1.bf16.msra.mxu0 %v578
    %935 = vmatprep.subr.bf16.mxu0 0
    %936 = vmatpush1.bf16.msra.mxu0 %v577
    %937 = vmatprep.subr.bf16.mxu0 0
    %938 = vmatpush2.bf16.msra.mxu0 %v592
    %939 = vmatprep.subr.bf16.mxu0 0
    %940 = vmatpush2.bf16.msra.mxu0 %v591
    %941 = vmatprep.subr.bf16.mxu0 0
    %942 = vmatpush2.bf16.msra.mxu0 %v590
    %943 = vmatprep.subr.bf16.mxu0 0
    %944 = vmatpush2.bf16.msra.mxu0 %v589
    %945 = vmatprep.subr.bf16.mxu0 0
    %946 = vmatpush2.bf16.msra.mxu0 %v588
    %947 = vmatprep.subr.bf16.mxu0 0
    %948 = vmatpush2.bf16.msra.mxu0 %v587
    %949 = vmatprep.subr.bf16.mxu0 0
    %950 = vmatpush2.bf16.msra.mxu0 %v586
    %951 = vmatprep.subr.bf16.mxu0 0
    %952 = vmatpush2.bf16.msra.mxu0 %v585
    %953 = vmatprep.mubr.bf16.mxu0 %v83
    %954 = vmatmul.mubr.bf16.gmra.mxu0 %v82
    %v955 = vpop.f32.mrf.mxu0
    %v956 = vadd.f32 %v916, %v955
    %v957 = vpop.f32.mrf.mxu0
    %v958 = vpop.f32.mrf.mxu0
    %v959 = vpop.f32.mrf.mxu0
    %960 = vdwg.mxu0
    %961 = vmatprep.subr.bf16.mxu0 0
    %962 = vmatpush1.bf16.msra.mxu0 %v600
    %963 = vmatprep.subr.bf16.mxu0 0
    %964 = vmatpush1.bf16.msra.mxu0 %v599
    %965 = vmatprep.subr.bf16.mxu0 0
    %966 = vmatpush1.bf16.msra.mxu0 %v598
    %967 = vmatprep.subr.bf16.mxu0 0
    %968 = vmatpush1.bf16.msra.mxu0 %v597
    %969 = vmatprep.subr.bf16.mxu0 0
    %970 = vmatpush1.bf16.msra.mxu0 %v596
    %971 = vmatprep.subr.bf16.mxu0 0
    %972 = vmatpush1.bf16.msra.mxu0 %v595
    %973 = vmatprep.subr.bf16.mxu0 0
    %974 = vmatpush1.bf16.msra.mxu0 %v594
    %975 = vmatprep.subr.bf16.mxu0 0
    %976 = vmatpush1.bf16.msra.mxu0 %v593
    %977 = vmatprep.subr.bf16.mxu0 0
    %978 = vmatpush2.bf16.msra.mxu0 %v608
    %979 = vmatprep.subr.bf16.mxu0 0
    %980 = vmatpush2.bf16.msra.mxu0 %v607
    %981 = vmatprep.subr.bf16.mxu0 0
    %982 = vmatpush2.bf16.msra.mxu0 %v606
    %983 = vmatprep.subr.bf16.mxu0 0
    %984 = vmatpush2.bf16.msra.mxu0 %v605
    %985 = vmatprep.subr.bf16.mxu0 0
    %986 = vmatpush2.bf16.msra.mxu0 %v604
    %987 = vmatprep.subr.bf16.mxu0 0
    %988 = vmatpush2.bf16.msra.mxu0 %v603
    %989 = vmatprep.subr.bf16.mxu0 0
    %990 = vmatpush2.bf16.msra.mxu0 %v602
    %991 = vmatprep.subr.bf16.mxu0 0
    %992 = vmatpush2.bf16.msra.mxu0 %v601
    %993 = vmatprep.mubr.bf16.mxu0 %v85
    %994 = vmatmul.mubr.bf16.gmra.mxu0 %v84
    %v995 = vpop.f32.mrf.mxu0
    %v996 = vadd.f32 %v956, %v995
    %v997 = vpop.f32.mrf.mxu0
    %v998 = vpop.f32.mrf.mxu0
    %v999 = vpop.f32.mrf.mxu0
    %1000 = vdwg.mxu0
    %1001 = vmatprep.subr.bf16.mxu0 0
    %1002 = vmatpush1.bf16.msra.mxu0 %v616
    %1003 = vmatprep.subr.bf16.mxu0 0
    %1004 = vmatpush1.bf16.msra.mxu0 %v615
    %1005 = vmatprep.subr.bf16.mxu0 0
    %1006 = vmatpush1.bf16.msra.mxu0 %v614
    %1007 = vmatprep.subr.bf16.mxu0 0
    %1008 = vmatpush1.bf16.msra.mxu0 %v613
    %1009 = vmatprep.subr.bf16.mxu0 0
    %1010 = vmatpush1.bf16.msra.mxu0 %v612
    %1011 = vmatprep.subr.bf16.mxu0 0
    %1012 = vmatpush1.bf16.msra.mxu0 %v611
    %1013 = vmatprep.subr.bf16.mxu0 0
    %1014 = vmatpush1.bf16.msra.mxu0 %v610
    %1015 = vmatprep.subr.bf16.mxu0 0
    %1016 = vmatpush1.bf16.msra.mxu0 %v609
    %1017 = vmatprep.subr.bf16.mxu0 0
    %1018 = vmatpush2.bf16.msra.mxu0 %v624
    %1019 = vmatprep.subr.bf16.mxu0 0
    %1020 = vmatpush2.bf16.msra.mxu0 %v623
    %1021 = vmatprep.subr.bf16.mxu0 0
    %1022 = vmatpush2.bf16.msra.mxu0 %v622
    %1023 = vmatprep.subr.bf16.mxu0 0
    %1024 = vmatpush2.bf16.msra.mxu0 %v621
    %1025 = vmatprep.subr.bf16.mxu0 0
    %1026 = vmatpush2.bf16.msra.mxu0 %v620
    %1027 = vmatprep.subr.bf16.mxu0 0
    %1028 = vmatpush2.bf16.msra.mxu0 %v619
    %1029 = vmatprep.subr.bf16.mxu0 0
    %1030 = vmatpush2.bf16.msra.mxu0 %v618
    %1031 = vmatprep.subr.bf16.mxu0 0
    %1032 = vmatpush2.bf16.msra.mxu0 %v617
    %1033 = vmatprep.mubr.bf16.mxu0 %v87
    %1034 = vmatmul.mubr.bf16.gmra.mxu0 %v86
    %v1035 = vpop.f32.mrf.mxu0
    %v1036 = vadd.f32 %v996, %v1035
    %v1037 = vpop.f32.mrf.mxu0
    %v1038 = vpop.f32.mrf.mxu0
    %v1039 = vpop.f32.mrf.mxu0
    %1040 = vdwg.mxu0
    %1041 = vmatprep.subr.bf16.mxu0 0
    %1042 = vmatpush1.bf16.msra.mxu0 %v632
    %1043 = vmatprep.subr.bf16.mxu0 0
    %1044 = vmatpush1.bf16.msra.mxu0 %v631
    %1045 = vmatprep.subr.bf16.mxu0 0
    %1046 = vmatpush1.bf16.msra.mxu0 %v630
    %1047 = vmatprep.subr.bf16.mxu0 0
    %1048 = vmatpush1.bf16.msra.mxu0 %v629
    %1049 = vmatprep.subr.bf16.mxu0 0
    %1050 = vmatpush1.bf16.msra.mxu0 %v628
    %1051 = vmatprep.subr.bf16.mxu0 0
    %1052 = vmatpush1.bf16.msra.mxu0 %v627
    %1053 = vmatprep.subr.bf16.mxu0 0
    %1054 = vmatpush1.bf16.msra.mxu0 %v626
    %1055 = vmatprep.subr.bf16.mxu0 0
    %1056 = vmatpush1.bf16.msra.mxu0 %v625
    %1057 = vmatprep.subr.bf16.mxu0 0
    %1058 = vmatpush2.bf16.msra.mxu0 %v640
    %1059 = vmatprep.subr.bf16.mxu0 0
    %1060 = vmatpush2.bf16.msra.mxu0 %v639
    %1061 = vmatprep.subr.bf16.mxu0 0
    %1062 = vmatpush2.bf16.msra.mxu0 %v638
    %1063 = vmatprep.subr.bf16.mxu0 0
    %1064 = vmatpush2.bf16.msra.mxu0 %v637
    %1065 = vmatprep.subr.bf16.mxu0 0
    %1066 = vmatpush2.bf16.msra.mxu0 %v636
    %1067 = vmatprep.subr.bf16.mxu0 0
    %1068 = vmatpush2.bf16.msra.mxu0 %v635
    %1069 = vmatprep.subr.bf16.mxu0 0
    %1070 = vmatpush2.bf16.msra.mxu0 %v634
    %1071 = vmatprep.subr.bf16.mxu0 0
    %1072 = vmatpush2.bf16.msra.mxu0 %v633
    %1073 = vmatprep.mubr.bf16.mxu0 %v89
    %1074 = vmatmul.mubr.bf16.gmra.mxu0 %v88
    %v1075 = vpop.f32.mrf.mxu0
    %v1076 = vadd.f32 %v1036, %v1075
    %v1077 = vpop.f32.mrf.mxu0
    %v1078 = vpop.f32.mrf.mxu0
    %v1079 = vpop.f32.mrf.mxu0
    %1080 = vdwg.mxu0
    %1081 = vmatprep.subr.bf16.mxu0 0
    %1082 = vmatpush1.bf16.msra.mxu0 %v648
    %1083 = vmatprep.subr.bf16.mxu0 0
    %1084 = vmatpush1.bf16.msra.mxu0 %v647
    %1085 = vmatprep.subr.bf16.mxu0 0
    %1086 = vmatpush1.bf16.msra.mxu0 %v646
    %1087 = vmatprep.subr.bf16.mxu0 0
    %1088 = vmatpush1.bf16.msra.mxu0 %v645
    %1089 = vmatprep.subr.bf16.mxu0 0
    %1090 = vmatpush1.bf16.msra.mxu0 %v644
    %1091 = vmatprep.subr.bf16.mxu0 0
    %1092 = vmatpush1.bf16.msra.mxu0 %v643
    %1093 = vmatprep.subr.bf16.mxu0 0
    %1094 = vmatpush1.bf16.msra.mxu0 %v642
    %1095 = vmatprep.subr.bf16.mxu0 0
    %1096 = vmatpush1.bf16.msra.mxu0 %v641
    %1097 = vmatprep.subr.bf16.mxu0 0
    %1098 = vmatpush2.bf16.msra.mxu0 0
    %1099 = vmatprep.subr.bf16.mxu0 0
    %1100 = vmatpush2.bf16.msra.mxu0 0
    %1101 = vmatprep.subr.bf16.mxu0 0
    %1102 = vmatpush2.bf16.msra.mxu0 0
    %1103 = vmatprep.subr.bf16.mxu0 0
    %1104 = vmatpush2.bf16.msra.mxu0 0
    %1105 = vmatprep.subr.bf16.mxu0 0
    %1106 = vmatpush2.bf16.msra.mxu0 0
    %1107 = vmatprep.subr.bf16.mxu0 0
    %1108 = vmatpush2.bf16.msra.mxu0 0
    %1109 = vmatprep.subr.bf16.mxu0 0
    %1110 = vmatpush2.bf16.msra.mxu0 0
    %1111 = vmatprep.subr.bf16.mxu0 0
    %1112 = vmatpush2.bf16.msra.mxu0 0
    %1113 = vmatprep.mubr.bf16.mxu0 0
    %1114 = vmatmul.mubr.bf16.gmra.mxu0 %v90
    %v1115 = vpop.f32.mrf.mxu0
    %v1116 = vadd.f32 %v1076, %v1115
    %v1117 = vpop.f32.mrf.mxu0
    %v1118 = vpop.f32.mrf.mxu0
    %v1119 = vpop.f32.mrf.mxu0
    %1120 = vdwg.mxu0
    %1121 = vmatprep.subr.bf16.mxu0 0
    %1122 = vmatpush1.bf16.msra.mxu0 %v584
    %1123 = vmatprep.subr.bf16.mxu0 0
    %1124 = vmatpush1.bf16.msra.mxu0 %v583
    %1125 = vmatprep.subr.bf16.mxu0 0
    %1126 = vmatpush1.bf16.msra.mxu0 %v582
    %1127 = vmatprep.subr.bf16.mxu0 0
    %1128 = vmatpush1.bf16.msra.mxu0 %v581
    %1129 = vmatprep.subr.bf16.mxu0 0
    %1130 = vmatpush1.bf16.msra.mxu0 %v580
    %1131 = vmatprep.subr.bf16.mxu0 0
    %1132 = vmatpush1.bf16.msra.mxu0 %v579
    %1133 = vmatprep.subr.bf16.mxu0 0
    %1134 = vmatpush1.bf16.msra.mxu0 %v578
    %1135 = vmatprep.subr.bf16.mxu0 0
    %1136 = vmatpush1.bf16.msra.mxu0 %v577
    %1137 = vmatprep.subr.bf16.mxu0 0
    %1138 = vmatpush2.bf16.msra.mxu0 %v592
    %1139 = vmatprep.subr.bf16.mxu0 0
    %1140 = vmatpush2.bf16.msra.mxu0 %v591
    %1141 = vmatprep.subr.bf16.mxu0 0
    %1142 = vmatpush2.bf16.msra.mxu0 %v590
    %1143 = vmatprep.subr.bf16.mxu0 0
    %1144 = vmatpush2.bf16.msra.mxu0 %v589
    %1145 = vmatprep.subr.bf16.mxu0 0
    %1146 = vmatpush2.bf16.msra.mxu0 %v588
    %1147 = vmatprep.subr.bf16.mxu0 0
    %1148 = vmatpush2.bf16.msra.mxu0 %v587
    %1149 = vmatprep.subr.bf16.mxu0 0
    %1150 = vmatpush2.bf16.msra.mxu0 %v586
    %1151 = vmatprep.subr.bf16.mxu0 0
    %1152 = vmatpush2.bf16.msra.mxu0 %v585
    %1153 = vmatprep.mubr.bf16.mxu0 %v137
    %1154 = vmatmul.mubr.bf16.gmra.mxu0 %v136
    %v1155 = vpop.f32.mrf.mxu0
    %v1156 = vadd.f32 0.0, %v1155
    %v1157 = vpop.f32.mrf.mxu0
    %v1158 = vpop.f32.mrf.mxu0
    %v1159 = vpop.f32.mrf.mxu0
    %1160 = vdwg.mxu0
    %1161 = vmatprep.subr.bf16.mxu0 0
    %1162 = vmatpush1.bf16.msra.mxu0 %v600
    %1163 = vmatprep.subr.bf16.mxu0 0
    %1164 = vmatpush1.bf16.msra.mxu0 %v599
    %1165 = vmatprep.subr.bf16.mxu0 0
    %1166 = vmatpush1.bf16.msra.mxu0 %v598
    %1167 = vmatprep.subr.bf16.mxu0 0
    %1168 = vmatpush1.bf16.msra.mxu0 %v597
    %1169 = vmatprep.subr.bf16.mxu0 0
    %1170 = vmatpush1.bf16.msra.mxu0 %v596
    %1171 = vmatprep.subr.bf16.mxu0 0
    %1172 = vmatpush1.bf16.msra.mxu0 %v595
    %1173 = vmatprep.subr.bf16.mxu0 0
    %1174 = vmatpush1.bf16.msra.mxu0 %v594
    %1175 = vmatprep.subr.bf16.mxu0 0
    %1176 = vmatpush1.bf16.msra.mxu0 %v593
    %1177 = vmatprep.subr.bf16.mxu0 0
    %1178 = vmatpush2.bf16.msra.mxu0 %v608
    %1179 = vmatprep.subr.bf16.mxu0 0
    %1180 = vmatpush2.bf16.msra.mxu0 %v607
    %1181 = vmatprep.subr.bf16.mxu0 0
    %1182 = vmatpush2.bf16.msra.mxu0 %v606
    %1183 = vmatprep.subr.bf16.mxu0 0
    %1184 = vmatpush2.bf16.msra.mxu0 %v605
    %1185 = vmatprep.subr.bf16.mxu0 0
    %1186 = vmatpush2.bf16.msra.mxu0 %v604
    %1187 = vmatprep.subr.bf16.mxu0 0
    %1188 = vmatpush2.bf16.msra.mxu0 %v603
    %1189 = vmatprep.subr.bf16.mxu0 0
    %1190 = vmatpush2.bf16.msra.mxu0 %v602
    %1191 = vmatprep.subr.bf16.mxu0 0
    %1192 = vmatpush2.bf16.msra.mxu0 %v601
    %1193 = vmatprep.mubr.bf16.mxu0 %v139
    %1194 = vmatmul.mubr.bf16.gmra.mxu0 %v138
    %v1195 = vpop.f32.mrf.mxu0
    %v1196 = vadd.f32 %v1156, %v1195
    %v1197 = vpop.f32.mrf.mxu0
    %v1198 = vpop.f32.mrf.mxu0
    %v1199 = vpop.f32.mrf.mxu0
    %1200 = vdwg.mxu0
    %1201 = vmatprep.subr.bf16.mxu0 0
    %1202 = vmatpush1.bf16.msra.mxu0 %v616
    %1203 = vmatprep.subr.bf16.mxu0 0
    %1204 = vmatpush1.bf16.msra.mxu0 %v615
    %1205 = vmatprep.subr.bf16.mxu0 0
    %1206 = vmatpush1.bf16.msra.mxu0 %v614
    %1207 = vmatprep.subr.bf16.mxu0 0
    %1208 = vmatpush1.bf16.msra.mxu0 %v613
    %1209 = vmatprep.subr.bf16.mxu0 0
    %1210 = vmatpush1.bf16.msra.mxu0 %v612
    %1211 = vmatprep.subr.bf16.mxu0 0
    %1212 = vmatpush1.bf16.msra.mxu0 %v611
    %1213 = vmatprep.subr.bf16.mxu0 0
    %1214 = vmatpush1.bf16.msra.mxu0 %v610
    %1215 = vmatprep.subr.bf16.mxu0 0
    %1216 = vmatpush1.bf16.msra.mxu0 %v609
    %1217 = vmatprep.subr.bf16.mxu0 0
    %1218 = vmatpush2.bf16.msra.mxu0 %v624
    %1219 = vmatprep.subr.bf16.mxu0 0
    %1220 = vmatpush2.bf16.msra.mxu0 %v623
    %1221 = vmatprep.subr.bf16.mxu0 0
    %1222 = vmatpush2.bf16.msra.mxu0 %v622
    %1223 = vmatprep.subr.bf16.mxu0 0
    %1224 = vmatpush2.bf16.msra.mxu0 %v621
    %1225 = vmatprep.subr.bf16.mxu0 0
    %1226 = vmatpush2.bf16.msra.mxu0 %v620
    %1227 = vmatprep.subr.bf16.mxu0 0
    %1228 = vmatpush2.bf16.msra.mxu0 %v619
    %1229 = vmatprep.subr.bf16.mxu0 0
    %1230 = vmatpush2.bf16.msra.mxu0 %v618
    %1231 = vmatprep.subr.bf16.mxu0 0
    %1232 = vmatpush2.bf16.msra.mxu0 %v617
    %1233 = vmatprep.mubr.bf16.mxu0 %v141
    %1234 = vmatmul.mubr.bf16.gmra.mxu0 %v140
    %v1235 = vpop.f32.mrf.mxu0
    %v1236 = vadd.f32 %v1196, %v1235
    %v1237 = vpop.f32.mrf.mxu0
    %v1238 = vpop.f32.mrf.mxu0
    %v1239 = vpop.f32.mrf.mxu0
    %1240 = vdwg.mxu0
    %1241 = vmatprep.subr.bf16.mxu0 0
    %1242 = vmatpush1.bf16.msra.mxu0 %v632
    %1243 = vmatprep.subr.bf16.mxu0 0
    %1244 = vmatpush1.bf16.msra.mxu0 %v631
    %1245 = vmatprep.subr.bf16.mxu0 0
    %1246 = vmatpush1.bf16.msra.mxu0 %v630
    %1247 = vmatprep.subr.bf16.mxu0 0
    %1248 = vmatpush1.bf16.msra.mxu0 %v629
    %1249 = vmatprep.subr.bf16.mxu0 0
    %1250 = vmatpush1.bf16.msra.mxu0 %v628
    %1251 = vmatprep.subr.bf16.mxu0 0
    %1252 = vmatpush1.bf16.msra.mxu0 %v627
    %1253 = vmatprep.subr.bf16.mxu0 0
    %1254 = vmatpush1.bf16.msra.mxu0 %v626
    %1255 = vmatprep.subr.bf16.mxu0 0
    %1256 = vmatpush1.bf16.msra.mxu0 %v625
    %1257 = vmatprep.subr.bf16.mxu0 0
    %1258 = vmatpush2.bf16.msra.mxu0 %v640
    %1259 = vmatprep.subr.bf16.mxu0 0
    %1260 = vmatpush2.bf16.msra.mxu0 %v639
    %1261 = vmatprep.subr.bf16.mxu0 0
    %1262 = vmatpush2.bf16.msra.mxu0 %v638
    %1263 = vmatprep.subr.bf16.mxu0 0
    %1264 = vmatpush2.bf16.msra.mxu0 %v637
    %1265 = vmatprep.subr.bf16.mxu0 0
    %1266 = vmatpush2.bf16.msra.mxu0 %v636
    %1267 = vmatprep.subr.bf16.mxu0 0
    %1268 = vmatpush2.bf16.msra.mxu0 %v635
    %1269 = vmatprep.subr.bf16.mxu0 0
    %1270 = vmatpush2.bf16.msra.mxu0 %v634
    %1271 = vmatprep.subr.bf16.mxu0 0
    %1272 = vmatpush2.bf16.msra.mxu0 %v633
    %1273 = vmatprep.mubr.bf16.mxu0 %v143
    %1274 = vmatmul.mubr.bf16.gmra.mxu0 %v142
    %v1275 = vpop.f32.mrf.mxu0
    %v1276 = vadd.f32 %v1236, %v1275
    %v1277 = vpop.f32.mrf.mxu0
    %v1278 = vpop.f32.mrf.mxu0
    %v1279 = vpop.f32.mrf.mxu0
    %1280 = vdwg.mxu0
    %1281 = vmatprep.subr.bf16.mxu0 0
    %1282 = vmatpush1.bf16.msra.mxu0 %v648
    %1283 = vmatprep.subr.bf16.mxu0 0
    %1284 = vmatpush1.bf16.msra.mxu0 %v647
    %1285 = vmatprep.subr.bf16.mxu0 0
    %1286 = vmatpush1.bf16.msra.mxu0 %v646
    %1287 = vmatprep.subr.bf16.mxu0 0
    %1288 = vmatpush1.bf16.msra.mxu0 %v645
    %1289 = vmatprep.subr.bf16.mxu0 0
    %1290 = vmatpush1.bf16.msra.mxu0 %v644
    %1291 = vmatprep.subr.bf16.mxu0 0
    %1292 = vmatpush1.bf16.msra.mxu0 %v643
    %1293 = vmatprep.subr.bf16.mxu0 0
    %1294 = vmatpush1.bf16.msra.mxu0 %v642
    %1295 = vmatprep.subr.bf16.mxu0 0
    %1296 = vmatpush1.bf16.msra.mxu0 %v641
    %1297 = vmatprep.subr.bf16.mxu0 0
    %1298 = vmatpush2.bf16.msra.mxu0 0
    %1299 = vmatprep.subr.bf16.mxu0 0
    %1300 = vmatpush2.bf16.msra.mxu0 0
    %1301 = vmatprep.subr.bf16.mxu0 0
    %1302 = vmatpush2.bf16.msra.mxu0 0
    %1303 = vmatprep.subr.bf16.mxu0 0
    %1304 = vmatpush2.bf16.msra.mxu0 0
    %1305 = vmatprep.subr.bf16.mxu0 0
    %1306 = vmatpush2.bf16.msra.mxu0 0
    %1307 = vmatprep.subr.bf16.mxu0 0
    %1308 = vmatpush2.bf16.msra.mxu0 0
    %1309 = vmatprep.subr.bf16.mxu0 0
    %1310 = vmatpush2.bf16.msra.mxu0 0
    %1311 = vmatprep.subr.bf16.mxu0 0
    %1312 = vmatpush2.bf16.msra.mxu0 0
    %1313 = vmatprep.mubr.bf16.mxu0 0
    %1314 = vmatmul.mubr.bf16.gmra.mxu0 %v144
    %v1315 = vpop.f32.mrf.mxu0
    %v1316 = vadd.f32 %v1276, %v1315
    %v1317 = vpop.f32.mrf.mxu0
    %v1318 = vpop.f32.mrf.mxu0
    %v1319 = vpop.f32.mrf.mxu0
    %1320 = vdwg.mxu0
    %v1321 = vadd.f32 %v1116, %v1316
    %v1322 = vsub.f32 %v1321, 1.0
    %v1323 = vmul.f32 %v1322, 0.5
    %v1324 = vmax.f32 %v1323, -0.9999999
    %v1325 = vmin.f32 %v1324, 0.9999999
    %v1326 = vand.u32 2147483647, %v1325
    %v1327 = vmul.f32 %v1326, -0.0012624911
    %v1328 = vadd.f32 %v1327, 0.00667009
    %v1329 = vmul.f32 %v1328, %v1326
    %v1330 = vadd.f32 %v1329, -0.017088126
    %v1331 = vmul.f32 %v1330, %v1326
    %v1332 = vadd.f32 %v1331, 0.03089188
    %v1333 = vmul.f32 %v1332, %v1326
    %v1334 = vadd.f32 %v1333, -0.050174303
    %v1335 = vmul.f32 %v1334, %v1326
    %v1336 = vadd.f32 %v1335, 0.08897899
    %v1337 = vmul.f32 %v1336, %v1326
    %v1338 = vadd.f32 %v1337, -0.2145988
    %v1339 = vmul.f32 %v1338, %v1326
    %v1340 = vadd.f32 %v1339, 1.5707963
    %v1341 = vsub.f32 1.0, %v1326
    %v1342 = vmax.f32 %v1341, 0.0
    %v1343 = vrsqrt.pop %v1342
    %v1344 = vmul.f32 %v1342, %v1343
    %vm1345 = vcmp.eq.f32.partialorder %v1342, inf
    %v1346 = vsel %vm1345, %v1342, %v1344
    %vm1347 = vcmp.eq.f32.partialorder %v1342, 0.0
    %v1348 = vand.u32 %v1342, 2147483648
    %v1349 = vsel %vm1347, %v1348, %v1346
    %v1350 = vmul.f32 %v1349, %v1340
    %vm1351 = vcmp.lt.f32.partialorder %v1325, 0.0
    %v1352 = vsub.f32 3.1415927, %v1350
    %v1353 = vsel %vm1351, %v1352, %v1350
    %p1354 = scmp.ne.s32.totalorder 0, 0
    // Predicated region
    $region26: #{tpu_custom_call.1} parent=1 // pred_check
      %p1355 = pneg %p1354
    $region27: #{tpu_custom_call.1} parent=1 // pred_check_branch
      %1357 = sbr.rel (%p1355) target = $region29
    $region28: #{tpu_custom_call.1} parent=1 // pred_region
      %1358 = vadd.xlane.f32.xlu0 %v1353
      %v1359 = vpop.xlane.xlu0 %1358
      %v1360 = vrot.slane %v1359, 4
      %v1361 = vadd.f32 %v1359, %v1360
      %v1362 = vrot.slane %v1361, 2
      %v1363 = vadd.f32 %v1361, %v1362
      %v1364 = vrot.slane %v1363, 1
      %v1365 = vadd.f32 %v1363, %v1364
      %s1366 = vtos %v1365
      %v1367 = vstv %s1366
      %vm1368 = vcmask 0
      %1369 = vst.msk [vmem:[#allocation10] sm:$0x1] %vm1368, %v1367
    $region29: #{tpu_custom_call.1} parent=1 // pred_fallthru
      _
    %p1370 = scmp.eq.s32.totalorder 0, 0
    // Predicated region
    $region30: #{tpu_custom_call.1} parent=1 // pred_check
      %p1371 = pneg %p1370
    $region31: #{tpu_custom_call.1} parent=1 // pred_check_branch
      %1373 = sbr.rel (%p1371) target = $region33
    $region32: #{tpu_custom_call.1} parent=1 // pred_region
      %v1374 = vlaneseq
      %v1375 = vshrl.u32 %v1374, 7
      %v1376 = vlaneseq
      %v1377 = vand.u32 %v1376, 127
      %s1378 = smul.u32 0, 1024
      %v1379 = vmul.u32 %v1375, 128
      %v1380 = vstv %s1378
      %v1381 = vadd.s32 %v1380, %v1379
      %v1382 = vadd.s32 %v1381, %v1377
      %s1383 = sld [smem:[#allocation3]]
      %v1384 = vstv %s1383
      %vm1385 = vcmp.lt.s32.totalorder %v1382, %v1384
      %v1386 = vsel %vm1385, %v1353, 0.0
      %1387 = vadd.xlane.f32.xlu0 %v1386
      %v1388 = vpop.xlane.xlu0 %1387
      %v1389 = vrot.slane %v1388, 4
      %v1390 = vadd.f32 %v1388, %v1389
      %v1391 = vrot.slane %v1390, 2
      %v1392 = vadd.f32 %v1390, %v1391
      %v1393 = vrot.slane %v1392, 1
      %v1394 = vadd.f32 %v1392, %v1393
      %s1395 = vtos %v1394
      %v1396 = vstv %s1395
      %vm1397 = vcmask 0
      %1398 = vst.msk [vmem:[#allocation10] sm:$0x1] %vm1397, %v1396
    $region33: #{tpu_custom_call.1} parent=1 // pred_fallthru
      _
    // Predicated region
    $region34: #{tpu_custom_call.1} parent=1 // pred_check
      _
    $region35: #{tpu_custom_call.1} parent=1 // pred_check_branch
      %1400 = sbr.rel (0) target = $region37
    $region36: #{tpu_custom_call.1} parent=1 // pred_region
      %s1402 = ssub.s32 16, 16
      %1403 = vsyncadd [#allocation6], %s1402
      %s1405 = sshll.u32 [#allocation10], 4
      %s1406 = int_to_ptr.vmem [resolvable:$true] %s1405
      %1408 = dma.vmem_to_hbm [thread:$0]  %s1406, 16, %s4, [#allocation6]
    $region37: #{tpu_custom_call.1} parent=1 // pred_fallthru
      _
    // Predicated region
    $region38: #{tpu_custom_call.1} parent=1 // pred_check
      _
    $region39: #{tpu_custom_call.1} parent=1 // pred_check_branch
      %1410 = sbr.rel (0) target = $region41
    $region40: #{tpu_custom_call.1} parent=1 // pred_region
      %1411 = dma.done [#allocation6], 16
    $region41: #{tpu_custom_call.1} parent=1 // pred_fallthru
      _
    %1412 = vsyncpa [#allocation5], 1
    %1413 = vsyncpa [#allocation8], 1
    %1414 = vsyncpa [#allocation6], 1

</llo_original>
